<compile_context>
chip_gen: v5e
topology: v5e:2x2
jax: 0.10.0
libtpu: 0.0.40
codegen_flags: <defaults>
</compile_context>

<pallas_src>
import math
import functools

import jax
import jax.numpy as jnp
from jax.experimental import pallas as pl
from jax.experimental.pallas import tpu as pltpu


# ----------------------------- glue (plain JAX) -----------------------------

def timestep_embedding(timesteps, dim, max_period=10000):
    """Sinusoidal timestep embedding, matching the PyTorch reference."""
    half = dim // 2
    freqs = jnp.exp(
        -math.log(max_period) * jnp.arange(half, dtype=jnp.float32) / half
    )
    args = timesteps[:, None].astype(jnp.float32) * freqs[None]
    emb = jnp.concatenate([jnp.cos(args), jnp.sin(args)], axis=-1)
    if dim % 2:
        emb = jnp.concatenate([emb, jnp.zeros_like(emb[:, :1])], axis=-1)
    return emb


def _round_up(n, m):
    return ((n + m - 1) // m) * m


def _tpu_caps():
    """(vmem_capacity_bytes, has_bf16_eup) with conservative fallbacks."""
    vmem_cap = 64 * 1024 * 1024          # conservative default (v7x)
    try:
        info = pltpu.get_tpu_info()
        cap = getattr(info, "vmem_capacity_bytes", None)
        if cap:
            vmem_cap = int(cap)
    except Exception:
        pass
    bf16_eup = False                     # conservative: f32 tanh
    try:
        kind = jax.devices()[0].device_kind.lower()
        if ("v6" in kind) or ("v7" in kind):
            bf16_eup = True              # v6e/v7x have a bf16 EUP
    except Exception:
        pass
    return vmem_cap, bf16_eup


# ------------------------------- Pallas kernel ------------------------------

def _dnn_kernel(x_ref, emb_ref, *rest, n_layers, norm, tanh_dtype):
    """Fused DNN forward for one (batch tile, K tile) grid step.

    rest = (w0x, w0e, b0, w1, b1, ..., w_{L-1}, b_{L-1}, out_ref, acc_ref)

    Layer 0 consumes concat([x, emb]) implemented as a split matmul:
    the x-half weight is streamed over the K grid axis and accumulated into
    acc_ref (f32); the emb-half + bias initialise the accumulator at k == 0.
    Remaining layers + stores run only at the last K step.  Matmuls run on
    the MXU in bf16 with f32 accumulation.
    """
    out_ref = rest[-2]
    acc_ref = rest[-1]
    wb = rest[:-2]

    k = pl.program_id(1)
    nk = pl.num_programs(1)

    x = x_ref[...]                                   # bf16 (bt, k_tile)
    if norm:
        # F.normalize (p=2, eps=1e-12); only fused when the full feature dim
        # is resident in one K tile (norm flag is cleared otherwise).
        xf = x.astype(jnp.float32)
        nrm = jnp.sqrt(jnp.sum(xf * xf, axis=-1, keepdims=True))
        x = (xf / jnp.maximum(nrm, 1e-12)).astype(jnp.bfloat16)

    # TODO(synk): nn.Dropout treated as eval-mode identity (no RNG dropout).

    @pl.when(k == 0)
    def _():
        acc_ref[...] = (
            jnp.dot(emb_ref[...], wb[1][...], preferred_element_type=jnp.float32)
            + wb[2][...])

    acc_ref[...] += jnp.dot(x, wb[0][...], preferred_element_type=jnp.float32)

    @pl.when(k == nk - 1)
    def _():
        h = acc_ref[...]
        if n_layers > 1:
            h = jnp.tanh(h.astype(tanh_dtype))
        for li in range(1, n_layers):
            w = wb[2 * li + 1][...]
            b = wb[2 * li + 2][...]
            h = jnp.dot(h.astype(jnp.bfloat16), w,
                        preferred_element_type=jnp.float32) + b
            if li != n_layers - 1:
                h = jnp.tanh(h.astype(tanh_dtype))
        out_ref[...] = h.astype(out_ref.dtype)


# --------------------- one-time parameter preparation ------------------------

def prepare_dnn_params(emb_w, emb_b, layer_ws, layer_bs, in_dim,
                       *, lane=128, k_tile=None):
    """Pad + bf16-cast weights ONCE (not per forward call).

    Weights are (in, out) (== torch W.T); biases (1, out).  Layer 0's weight
    is split into an x-half (padded to a multiple of k_tile rows) and an
    emb-half so the kernel never slices or concatenates.
    """
    emb_size = emb_w.shape[0]
    n_layers = len(layer_ws)
    out_dims = [w.shape[-1] for w in layer_ws]
    dims_p = [_round_up(d, lane) for d in out_dims]
    emb_p = _round_up(emb_size, lane)
    in_p = _round_up(in_dim, lane)
    d0p = dims_p[0]

    # K tile: stream the big layer-0 x-weight in <= ~4 MiB bf16 slices.
    if k_tile is None:
        if in_p * d0p * 2 <= 4 * 1024 * 1024:
            k_tile = in_p
        else:
            rows = max(lane, ((4 * 1024 * 1024) // (2 * d0p)) // lane * lane)
            k_tile = min(in_p, rows)
    k_tile = max(lane, _round_up(int(k_tile), lane))
    in_pp = _round_up(in_p, k_tile)

    w0 = layer_ws[0]
    b0 = layer_bs[0].reshape(1, -1)
    w0x = jnp.pad(w0[:in_dim, :],
                  ((0, in_pp - in_dim), (0, d0p - out_dims[0]))
                  ).astype(jnp.bfloat16)
    w0e = jnp.pad(w0[in_dim:, :],
                  ((0, emb_p - emb_size), (0, d0p - out_dims[0]))
                  ).astype(jnp.bfloat16)
    b0p = jnp.pad(b0.astype(jnp.float32), ((0, 0), (0, d0p - out_dims[0])))
    wbs = [w0x, w0e, b0p]

    prev_d, prev_p = out_dims[0], d0p
    for li in range(1, n_layers):
        w = layer_ws[li]
        b = layer_bs[li].reshape(1, -1)
        d_in, d_out = w.shape
        assert d_in == prev_d
        wbs.append(jnp.pad(w, ((0, prev_p - d_in),
                               (0, dims_p[li] - d_out))).astype(jnp.bfloat16))
        wbs.append(jnp.pad(b.astype(jnp.float32),
                           ((0, 0), (0, dims_p[li] - d_out))))
        prev_d, prev_p = d_out, dims_p[li]

    return dict(
        emb_w=jnp.asarray(emb_w, jnp.float32),
        emb_b=jnp.asarray(emb_b, jnp.float32).reshape(1, -1),
        wbs=wbs,
        in_dim=in_dim, in_pp=in_pp, k_tile=k_tile,
        emb_size=emb_size, emb_p=emb_p,
        out_dims=out_dims, dims_p=dims_p, n_layers=n_layers,
    )


# ------------------------------- forward wrapper -----------------------------

def dnn_forward_pallas(x, time_emb, params, *, norm=False, batch_tile=None,
                       lane=128, sublane=8):
    B, in_dim = x.shape
    assert in_dim == params["in_dim"]
    wbs = params["wbs"]
    n_layers = params["n_layers"]
    dims_p = params["dims_p"]
    out_dim = params["out_dims"][-1]
    out_p = dims_p[-1]
    d0p = dims_p[0]
    emb_p = params["emb_p"]
    emb_size = params["emb_size"]
    in_pp = params["in_pp"]
    k_tile = params["k_tile"]
    num_k = in_pp // k_tile

    vmem_cap, bf16_eup = _tpu_caps()
    tanh_dtype = jnp.bfloat16 if bf16_eup else jnp.float32

    # --- tiny emb_layer matmul hoisted to plain JAX (too small for the MXU) --
    emb = time_emb.astype(jnp.float32) @ params["emb_w"] + params["emb_b"]

    # --- batch tiling: >=2 parallel grid steps (v7x dual-TC), big tiles ------
    max_tile = 256 if vmem_cap <= 96 * 1024 * 1024 else 512
    if batch_tile is None:
        B_r = _round_up(B, sublane)
        if B_r >= 2 * sublane:
            batch_tile = min(_round_up((B_r + 1) // 2, sublane), max_tile)
        else:
            batch_tile = B_r
    batch_tile = _round_up(batch_tile, sublane)
    B_p = _round_up(B, batch_tile)
    grid = (B_p // batch_tile, num_k)

    # --- x / emb as bf16, zero-padded (exact) --------------------------------
    xf = x.astype(jnp.float32)
    norm_in_kernel = bool(norm) and num_k == 1
    if norm and not norm_in_kernel:
        # TODO(synk): with K-tiled layer 0 the full-row L2 norm cannot be
        # fused into the kernel; do it here instead.
        nrm = jnp.sqrt(jnp.sum(xf * xf, axis=-1, keepdims=True))
        xf = xf / jnp.maximum(nrm, 1e-12)
    x_pad = jnp.pad(xf.astype(jnp.bfloat16),
                    ((0, B_p - B), (0, in_pp - in_dim)))
    emb_pad = jnp.pad(emb.astype(jnp.bfloat16),
                      ((0, B_p - B), (0, emb_p - emb_size)))

    # --- VMEM budget (streamed / pipelined pieces 2x, constants 1x) ----------
    max_dp = max(dims_p)
    est = (2 * 2 * batch_tile * (k_tile + emb_p)          # bf16 x/emb tiles
           + 2 * 4 * batch_tile * out_p                   # f32 output tile
           + 2 * 2 * k_tile * d0p                         # streamed w0x slices
           + sum(int(a.size) * a.dtype.itemsize for a in wbs[1:])  # constants
           + 4 * batch_tile * d0p                         # acc scratch
           + 2 * 4 * batch_tile * max_dp                  # live f32 h buffers
           + 2 * batch_tile * max_dp)                     # bf16 h fed to MXU
    vmem_limit = int(min(max(est * 1.25, 32 * 1024 * 1024), 0.9 * vmem_cap))

    kernel = functools.partial(_dnn_kernel, n_layers=n_layers,
                               norm=norm_in_kernel, tanh_dtype=tanh_dtype)

    def _run(single_buffer_weights):
        def _const_spec(arr):
            if single_buffer_weights:
                return pl.BlockSpec(arr.shape, lambda i, k: (0, 0),
                                    pipeline_mode=pl.Buffered(1))
            return pl.BlockSpec(arr.shape, lambda i, k: (0, 0))

        in_specs = [
            pl.BlockSpec((batch_tile, k_tile), lambda i, k: (i, k)),   # x tile
            pl.BlockSpec((batch_tile, emb_p), lambda i, k: (i, 0)),    # emb tile
            pl.BlockSpec((k_tile, d0p), lambda i, k: (k, 0)),          # w0x slice
        ] + [_const_spec(a) for a in wbs[1:]]                          # constants
        out_specs = pl.BlockSpec((batch_tile, out_p), lambda i, k: (i, 0))

        return pl.pallas_call(
            kernel,
            out_shape=jax.ShapeDtypeStruct((B_p, out_p), x.dtype),
            grid_spec=pltpu.PrefetchScalarGridSpec(
                num_scalar_prefetch=0,
                grid=grid,
                in_specs=in_specs,
                out_specs=out_specs,
                scratch_shapes=[pltpu.VMEM((batch_tile, d0p), jnp.float32)],
            ),
            compiler_params=pltpu.CompilerParams(
                dimension_semantics=("parallel", "arbitrary"),
                vmem_limit_bytes=vmem_limit),
        )(x_pad, emb_pad, *wbs)

    try:
        out_pad = _run(True)
        out_pad.block_until_ready()
    except Exception:
        # Fallback: some builds may reject Buffered(1) on input specs.
        out_pad = _run(False)

    return out_pad[:B, :out_dim]


# --------------------------- parameter construction --------------------------

def init_dnn_params(key, in_dims, out_dims, emb_size):
    """Deterministic init matching DNN.init_weights (Xavier-ish normal)."""
    assert out_dims[0] == in_dims[-1]
    in_dims_temp = [in_dims[0] + emb_size] + list(in_dims[1:])
    out_dims_temp = list(out_dims)

    def linear(key, d_in, d_out):
        kw, kb = jax.random.split(key)
        std = math.sqrt(2.0 / (d_in + d_out))
        # stored directly as (in, out) for the kernel (== torch W.T)
        w = jax.random.normal(kw, (d_in, d_out), jnp.float32) * std
        b = jax.random.normal(kb, (1, d_out), jnp.float32) * 0.001
        return w, b

    n_lin = 1 + (len(in_dims_temp) - 1) + (len(out_dims_temp) - 1)
    keys = jax.random.split(key, n_lin)
    k_iter = iter(keys)

    emb_w, emb_b = linear(next(k_iter), emb_size, emb_size)

    layer_ws, layer_bs = [], []
    for d_in, d_out in zip(in_dims_temp[:-1], in_dims_temp[1:]):
        w, b = linear(next(k_iter), d_in, d_out)
        layer_ws.append(w)
        layer_bs.append(b)
    for d_in, d_out in zip(out_dims_temp[:-1], out_dims_temp[1:]):
        w, b = linear(next(k_iter), d_in, d_out)
        layer_ws.append(w)
        layer_bs.append(b)
    return emb_w, emb_b, layer_ws, layer_bs


# ------------------------------ pure-JAX reference ---------------------------

def dnn_forward_ref(x, timesteps, emb_w, emb_b, layer_ws, layer_bs,
                    emb_size, norm=False):
    te = timestep_embedding(timesteps, emb_size)
    emb = te @ emb_w + emb_b
    if norm:
        x = x / jnp.maximum(jnp.linalg.norm(x, axis=-1, keepdims=True), 1e-12)
    h = jnp.concatenate([x, emb], axis=-1)
    n_layers = len(layer_ws)
    for i, (w, b) in enumerate(zip(layer_ws, layer_bs)):
        h = h @ w + b
        if i != n_layers - 1:
            h = jnp.tanh(h)
    return h


# ------------------------------------ main -----------------------------------

if __name__ == "__main__":
    # Small, module-consistent shapes.
    B = 32
    in_dims = [32, 16]      # in_layers: Linear(32+emb, 16)
    out_dims = [16, 32]     # out_layers: Linear(16, 32);  out_dims[0] == in_dims[-1]
    emb_size = 8
    norm = False

    key = jax.random.PRNGKey(0)
    k_param, k_x, k_t = jax.random.split(key, 3)

    emb_w, emb_b, layer_ws, layer_bs = init_dnn_params(
        k_param, in_dims, out_dims, emb_size)

    x = jax.random.normal(k_x, (B, in_dims[0]), jnp.float32)
    timesteps = jax.random.randint(k_t, (B,), 0, 1000)

    # glue: sinusoidal timestep embedding (cheap, plain JAX)
    time_emb = timestep_embedding(timesteps, emb_size)

    # one-time weight prep (pad + bf16 cast) -- not paid per forward call
    params = prepare_dnn_params(emb_w, emb_b, layer_ws, layer_bs, in_dims[0])

    out = dnn_forward_pallas(x, time_emb, params, norm=norm)
    out = jax.block_until_ready(out)

    ref = dnn_forward_ref(
        x, timesteps, emb_w, emb_b, layer_ws, layer_bs, emb_size, norm=norm)
    ref = jax.block_until_ready(ref)

    assert out.shape == (B, out_dims[-1]), out.shape
    max_err = float(jnp.max(jnp.abs(out - ref)))
    # bf16 MXU inputs with f32 accumulation vs. an all-f32 reference.
    assert jnp.allclose(out, ref, atol=5e-2, rtol=5e-2), max_err

    print("KERNEL_OK")
</pallas_src>

<mosaic_0001>
module attributes {stable_mosaic.version = 11 : i64} {
  func.func @_dnn_kernel(%arg0: i32, %arg1: i32, %arg2: memref<16x128xbf16, #tpu.memory_space<vmem>>, %arg3: memref<16x128xbf16, #tpu.memory_space<vmem>>, %arg4: memref<128x128xbf16, #tpu.memory_space<vmem>>, %arg5: memref<128x128xbf16, #tpu.memory_space<vmem>>, %arg6: memref<1x128xf32, #tpu.memory_space<vmem>>, %arg7: memref<128x128xbf16, #tpu.memory_space<vmem>>, %arg8: memref<1x128xf32, #tpu.memory_space<vmem>>, %arg9: memref<16x128xf32, #tpu.memory_space<vmem>>, %arg10: memref<16x128xf32, #tpu.memory_space<vmem>>) attributes {dimension_semantics = [#tpu.dimension_semantics<parallel>, #tpu.dimension_semantics<arbitrary>], iteration_bounds = array<i64: 2, 1>, scalar_prefetch = 0 : i64, scratch_operands = 1 : i64, tpu.core_type = #tpu.core_type<tc>, window_params = [{transform_indices = @transform_0, window_bounds = array<i64: 16, 128>}, {transform_indices = @transform_1, window_bounds = array<i64: 16, 128>}, {transform_indices = @transform_2, window_bounds = array<i64: 128, 128>}, {pipeline_mode = #tpu.pipeline_mode<synchronous>, transform_indices = @transform_3, window_bounds = array<i64: 128, 128>}, {pipeline_mode = #tpu.pipeline_mode<synchronous>, transform_indices = @transform_4, window_bounds = array<i64: 1, 128>}, {pipeline_mode = #tpu.pipeline_mode<synchronous>, transform_indices = @transform_5, window_bounds = array<i64: 128, 128>}, {pipeline_mode = #tpu.pipeline_mode<synchronous>, transform_indices = @transform_6, window_bounds = array<i64: 1, 128>}, {transform_indices = @transform_7, window_bounds = array<i64: 16, 128>}]} {
    %c0 = arith.constant 0 : index
    %c0_0 = arith.constant 0 : index
    %0 = vector.load %arg2[%c0, %c0_0] : memref<16x128xbf16, #tpu.memory_space<vmem>>, vector<16x128xbf16>
    %c0_i32 = arith.constant 0 : i32
    %1 = arith.cmpi eq, %arg1, %c0_i32 : i32
    %2 = arith.extui %1 : i1 to i32
    %c0_i32_1 = arith.constant 0 : i32
    %3 = arith.cmpi ne, %2, %c0_i32_1 : i32
    scf.if %3 {
      %c0_10 = arith.constant 0 : index
      %c0_11 = arith.constant 0 : index
      %12 = vector.load %arg3[%c0_10, %c0_11] : memref<16x128xbf16, #tpu.memory_space<vmem>>, vector<16x128xbf16>
      %c0_12 = arith.constant 0 : index
      %c0_13 = arith.constant 0 : index
      %13 = vector.load %arg5[%c0_12, %c0_13] : memref<128x128xbf16, #tpu.memory_space<vmem>>, vector<128x128xbf16>
      %cst_14 = arith.constant dense<0.000000e+00> : vector<16x128xf32>
      %14 = tpu.matmul %12, %13, %cst_14 {dimension_numbers = #tpu.dot_dimension_numbers<[1], [0], [0], [1], [0, 0, 1, 1], [], []>} : vector<16x128xbf16>, vector<128x128xbf16>, vector<16x128xf32> -> vector<16x128xf32>
      %c0_15 = arith.constant 0 : index
      %c0_16 = arith.constant 0 : index
      %15 = vector.load %arg6[%c0_15, %c0_16] : memref<1x128xf32, #tpu.memory_space<vmem>>, vector<1x128xf32>
      %16 = vector.broadcast %15 : vector<1x128xf32> to vector<16x128xf32>
      %17 = arith.addf %14, %16 : vector<16x128xf32>
      %c0_17 = arith.constant 0 : index
      %c0_18 = arith.constant 0 : index
      %18 = vector.load %arg10[%c0_17, %c0_18] : memref<16x128xf32, #tpu.memory_space<vmem>>, vector<16x128xf32>
      tpu.vector_store %arg10[%c0_17, %c0_18], %17 {strides = array<i32>} : memref<16x128xf32, #tpu.memory_space<vmem>>, vector<16x128xf32>,
    } else {
    }
    %c0_2 = arith.constant 0 : index
    %c0_3 = arith.constant 0 : index
    %4 = vector.load %arg10[%c0_2, %c0_3] : memref<16x128xf32, #tpu.memory_space<vmem>>, vector<16x128xf32>
    %c0_4 = arith.constant 0 : index
    %c0_5 = arith.constant 0 : index
    %5 = vector.load %arg4[%c0_4, %c0_5] : memref<128x128xbf16, #tpu.memory_space<vmem>>, vector<128x128xbf16>
    %cst = arith.constant dense<0.000000e+00> : vector<16x128xf32>
    %6 = tpu.matmul %0, %5, %cst {dimension_numbers = #tpu.dot_dimension_numbers<[1], [0], [0], [1], [0, 0, 1, 1], [], []>} : vector<16x128xbf16>, vector<128x128xbf16>, vector<16x128xf32> -> vector<16x128xf32>
    %7 = arith.addf %4, %6 : vector<16x128xf32>
    %c0_6 = arith.constant 0 : index
    %c0_7 = arith.constant 0 : index
    %8 = vector.load %arg10[%c0_6, %c0_7] : memref<16x128xf32, #tpu.memory_space<vmem>>, vector<16x128xf32>
    tpu.vector_store %arg10[%c0_6, %c0_7], %7 {strides = array<i32>} : memref<16x128xf32, #tpu.memory_space<vmem>>, vector<16x128xf32>,
    %c0_i32_8 = arith.constant 0 : i32
    %9 = arith.cmpi eq, %arg1, %c0_i32_8 : i32
    %10 = arith.extui %9 : i1 to i32
    %c0_i32_9 = arith.constant 0 : i32
    %11 = arith.cmpi ne, %10, %c0_i32_9 : i32
    scf.if %11 {
      %c0_10 = arith.constant 0 : index
      %c0_11 = arith.constant 0 : index
      %12 = vector.load %arg10[%c0_10, %c0_11] : memref<16x128xf32, #tpu.memory_space<vmem>>, vector<16x128xf32>
      %13 = math.tanh %12 : vector<16x128xf32>
      %c0_12 = arith.constant 0 : index
      %c0_13 = arith.constant 0 : index
      %14 = vector.load %arg7[%c0_12, %c0_13] : memref<128x128xbf16, #tpu.memory_space<vmem>>, vector<128x128xbf16>
      %c0_14 = arith.constant 0 : index
      %c0_15 = arith.constant 0 : index
      %15 = vector.load %arg8[%c0_14, %c0_15] : memref<1x128xf32, #tpu.memory_space<vmem>>, vector<1x128xf32>
      %16 = arith.truncf %13 : vector<16x128xf32> to vector<16x128xbf16>
      %cst_16 = arith.constant dense<0.000000e+00> : vector<16x128xf32>
      %17 = tpu.matmul %16, %14, %cst_16 {dimension_numbers = #tpu.dot_dimension_numbers<[1], [0], [0], [1], [0, 0, 1, 1], [], []>} : vector<16x128xbf16>, vector<128x128xbf16>, vector<16x128xf32> -> vector<16x128xf32>
      %18 = vector.broadcast %15 : vector<1x128xf32> to vector<16x128xf32>
      %19 = arith.addf %17, %18 : vector<16x128xf32>
      %c0_17 = arith.constant 0 : index
      %c0_18 = arith.constant 0 : index
      %20 = vector.load %arg9[%c0_17, %c0_18] : memref<16x128xf32, #tpu.memory_space<vmem>>, vector<16x128xf32>
      tpu.vector_store %arg9[%c0_17, %c0_18], %19 {strides = array<i32>} : memref<16x128xf32, #tpu.memory_space<vmem>>, vector<16x128xf32>,
    } else {
    }
    return
  }
  func.func @transform_0(%arg0: i32, %arg1: i32) -> (i32, i32) {
    %c0_i32 = arith.constant 0 : i32
    return %arg0, %arg1 : i32, i32
  }
  func.func @transform_1(%arg0: i32, %arg1: i32) -> (i32, i32) {
    %c0_i32 = arith.constant 0 : i32
    %c0_i32_0 = arith.constant 0 : i32
    return %arg0, %c0_i32 : i32, i32
  }
  func.func @transform_2(%arg0: i32, %arg1: i32) -> (i32, i32) {
    %c0_i32 = arith.constant 0 : i32
    %c0_i32_0 = arith.constant 0 : i32
    return %arg1, %c0_i32 : i32, i32
  }
  func.func @transform_3(%arg0: i32, %arg1: i32) -> (i32, i32) {
    %c0_i32 = arith.constant 0 : i32
    %c0_i32_0 = arith.constant 0 : i32
    %c0_i32_1 = arith.constant 0 : i32
    return %c0_i32, %c0_i32_0 : i32, i32
  }
  func.func @transform_4(%arg0: i32, %arg1: i32) -> (i32, i32) {
    %c0_i32 = arith.constant 0 : i32
    %c0_i32_0 = arith.constant 0 : i32
    %c0_i32_1 = arith.constant 0 : i32
    return %c0_i32, %c0_i32_0 : i32, i32
  }
  func.func @transform_5(%arg0: i32, %arg1: i32) -> (i32, i32) {
    %c0_i32 = arith.constant 0 : i32
    %c0_i32_0 = arith.constant 0 : i32
    %c0_i32_1 = arith.constant 0 : i32
    return %c0_i32, %c0_i32_0 : i32, i32
  }
  func.func @transform_6(%arg0: i32, %arg1: i32) -> (i32, i32) {
    %c0_i32 = arith.constant 0 : i32
    %c0_i32_0 = arith.constant 0 : i32
    %c0_i32_1 = arith.constant 0 : i32
    return %c0_i32, %c0_i32_0 : i32, i32
  }
  func.func @transform_7(%arg0: i32, %arg1: i32) -> (i32, i32) {
    %c0_i32 = arith.constant 0 : i32
    %c0_i32_0 = arith.constant 0 : i32
    return %arg0, %c0_i32 : i32, i32
  }
}

module attributes {stable_mosaic.version = 11 : i64} {
  func.func @_dnn_kernel(%arg0: i32, %arg1: i32, %arg2: memref<16x128xbf16, #tpu.memory_space<vmem>>, %arg3: memref<16x128xbf16, #tpu.memory_space<vmem>>, %arg4: memref<128x128xbf16, #tpu.memory_space<vmem>>, %arg5: memref<128x128xbf16, #tpu.memory_space<vmem>>, %arg6: memref<1x128xf32, #tpu.memory_space<vmem>>, %arg7: memref<128x128xbf16, #tpu.memory_space<vmem>>, %arg8: memref<1x128xf32, #tpu.memory_space<vmem>>, %arg9: memref<16x128xf32, #tpu.memory_space<vmem>>, %arg10: memref<16x128xf32, #tpu.memory_space<vmem>>) attributes {dimension_semantics = [#tpu.dimension_semantics<parallel>, #tpu.dimension_semantics<arbitrary>], iteration_bounds = array<i64: 2, 1>, scalar_prefetch = 0 : i64, scratch_operands = 1 : i64, tpu.core_type = #tpu.core_type<tc>, window_params = [{transform_indices = @transform_0, window_bounds = array<i64: 16, 128>}, {transform_indices = @transform_1, window_bounds = array<i64: 16, 128>}, {transform_indices = @transform_2, window_bounds = array<i64: 128, 128>}, {pipeline_mode = #tpu.pipeline_mode<synchronous>, transform_indices = @transform_3, window_bounds = array<i64: 128, 128>}, {pipeline_mode = #tpu.pipeline_mode<synchronous>, transform_indices = @transform_4, window_bounds = array<i64: 1, 128>}, {pipeline_mode = #tpu.pipeline_mode<synchronous>, transform_indices = @transform_5, window_bounds = array<i64: 128, 128>}, {pipeline_mode = #tpu.pipeline_mode<synchronous>, transform_indices = @transform_6, window_bounds = array<i64: 1, 128>}, {transform_indices = @transform_7, window_bounds = array<i64: 16, 128>}]} {
    %c0 = arith.constant 0 : index
    %c0_0 = arith.constant 0 : index
    %0 = vector.load %arg2[%c0, %c0_0] : memref<16x128xbf16, #tpu.memory_space<vmem>>, vector<16x128xbf16>
    %c0_i32 = arith.constant 0 : i32
    %1 = arith.cmpi eq, %arg1, %c0_i32 : i32
    %2 = arith.extui %1 : i1 to i32
    %c0_i32_1 = arith.constant 0 : i32
    %3 = arith.cmpi ne, %2, %c0_i32_1 : i32
    scf.if %3 {
      %c0_10 = arith.constant 0 : index
      %c0_11 = arith.constant 0 : index
      %12 = vector.load %arg3[%c0_10, %c0_11] : memref<16x128xbf16, #tpu.memory_space<vmem>>, vector<16x128xbf16>
      %c0_12 = arith.constant 0 : index
      %c0_13 = arith.constant 0 : index
      %13 = vector.load %arg5[%c0_12, %c0_13] : memref<128x128xbf16, #tpu.memory_space<vmem>>, vector<128x128xbf16>
      %cst_14 = arith.constant dense<0.000000e+00> : vector<16x128xf32>
      %14 = tpu.matmul %12, %13, %cst_14 {dimension_numbers = #tpu.dot_dimension_numbers<[1], [0], [0], [1], [0, 0, 1, 1], [], []>} : vector<16x128xbf16>, vector<128x128xbf16>, vector<16x128xf32> -> vector<16x128xf32>
      %c0_15 = arith.constant 0 : index
      %c0_16 = arith.constant 0 : index
      %15 = vector.load %arg6[%c0_15, %c0_16] : memref<1x128xf32, #tpu.memory_space<vmem>>, vector<1x128xf32>
      %16 = vector.broadcast %15 : vector<1x128xf32> to vector<16x128xf32>
      %17 = arith.addf %14, %16 : vector<16x128xf32>
      %c0_17 = arith.constant 0 : index
      %c0_18 = arith.constant 0 : index
      %18 = vector.load %arg10[%c0_17, %c0_18] : memref<16x128xf32, #tpu.memory_space<vmem>>, vector<16x128xf32>
      tpu.vector_store %arg10[%c0_17, %c0_18], %17 {strides = array<i32>} : memref<16x128xf32, #tpu.memory_space<vmem>>, vector<16x128xf32>,
    } else {
    }
    %c0_2 = arith.constant 0 : index
    %c0_3 = arith.constant 0 : index
    %4 = vector.load %arg10[%c0_2, %c0_3] : memref<16x128xf32, #tpu.memory_space<vmem>>, vector<16x128xf32>
    %c0_4 = arith.constant 0 : index
    %c0_5 = arith.constant 0 : index
    %5 = vector.load %arg4[%c0_4, %c0_5] : memref<128x128xbf16, #tpu.memory_space<vmem>>, vector<128x128xbf16>
    %cst = arith.constant dense<0.000000e+00> : vector<16x128xf32>
    %6 = tpu.matmul %0, %5, %cst {dimension_numbers = #tpu.dot_dimension_numbers<[1], [0], [0], [1], [0, 0, 1, 1], [], []>} : vector<16x128xbf16>, vector<128x128xbf16>, vector<16x128xf32> -> vector<16x128xf32>
    %7 = arith.addf %4, %6 : vector<16x128xf32>
    %c0_6 = arith.constant 0 : index
    %c0_7 = arith.constant 0 : index
    %8 = vector.load %arg10[%c0_6, %c0_7] : memref<16x128xf32, #tpu.memory_space<vmem>>, vector<16x128xf32>
    tpu.vector_store %arg10[%c0_6, %c0_7], %7 {strides = array<i32>} : memref<16x128xf32, #tpu.memory_space<vmem>>, vector<16x128xf32>,
    %c0_i32_8 = arith.constant 0 : i32
    %9 = arith.cmpi eq, %arg1, %c0_i32_8 : i32
    %10 = arith.extui %9 : i1 to i32
    %c0_i32_9 = arith.constant 0 : i32
    %11 = arith.cmpi ne, %10, %c0_i32_9 : i32
    scf.if %11 {
      %c0_10 = arith.constant 0 : index
      %c0_11 = arith.constant 0 : index
      %12 = vector.load %arg10[%c0_10, %c0_11] : memref<16x128xf32, #tpu.memory_space<vmem>>, vector<16x128xf32>
      %13 = math.tanh %12 : vector<16x128xf32>
      %c0_12 = arith.constant 0 : index
      %c0_13 = arith.constant 0 : index
      %14 = vector.load %arg7[%c0_12, %c0_13] : memref<128x128xbf16, #tpu.memory_space<vmem>>, vector<128x128xbf16>
      %c0_14 = arith.constant 0 : index
      %c0_15 = arith.constant 0 : index
      %15 = vector.load %arg8[%c0_14, %c0_15] : memref<1x128xf32, #tpu.memory_space<vmem>>, vector<1x128xf32>
      %16 = arith.truncf %13 : vector<16x128xf32> to vector<16x128xbf16>
      %cst_16 = arith.constant dense<0.000000e+00> : vector<16x128xf32>
      %17 = tpu.matmul %16, %14, %cst_16 {dimension_numbers = #tpu.dot_dimension_numbers<[1], [0], [0], [1], [0, 0, 1, 1], [], []>} : vector<16x128xbf16>, vector<128x128xbf16>, vector<16x128xf32> -> vector<16x128xf32>
      %18 = vector.broadcast %15 : vector<1x128xf32> to vector<16x128xf32>
      %19 = arith.addf %17, %18 : vector<16x128xf32>
      %c0_17 = arith.constant 0 : index
      %c0_18 = arith.constant 0 : index
      %20 = vector.load %arg9[%c0_17, %c0_18] : memref<16x128xf32, #tpu.memory_space<vmem>>, vector<16x128xf32>
      tpu.vector_store %arg9[%c0_17, %c0_18], %19 {strides = array<i32>} : memref<16x128xf32, #tpu.memory_space<vmem>>, vector<16x128xf32>,
    } else {
    }
    return
  }
  func.func @transform_0(%arg0: i32, %arg1: i32) -> (i32, i32) {
    %c0_i32 = arith.constant 0 : i32
    return %arg0, %arg1 : i32, i32
  }
  func.func @transform_1(%arg0: i32, %arg1: i32) -> (i32, i32) {
    %c0_i32 = arith.constant 0 : i32
    %c0_i32_0 = arith.constant 0 : i32
    return %arg0, %c0_i32 : i32, i32
  }
  func.func @transform_2(%arg0: i32, %arg1: i32) -> (i32, i32) {
    %c0_i32 = arith.constant 0 : i32
    %c0_i32_0 = arith.constant 0 : i32
    return %arg1, %c0_i32 : i32, i32
  }
  func.func @transform_3(%arg0: i32, %arg1: i32) -> (i32, i32) {
    %c0_i32 = arith.constant 0 : i32
    %c0_i32_0 = arith.constant 0 : i32
    %c0_i32_1 = arith.constant 0 : i32
    return %c0_i32, %c0_i32_0 : i32, i32
  }
  func.func @transform_4(%arg0: i32, %arg1: i32) -> (i32, i32) {
    %c0_i32 = arith.constant 0 : i32
    %c0_i32_0 = arith.constant 0 : i32
    %c0_i32_1 = arith.constant 0 : i32
    return %c0_i32, %c0_i32_0 : i32, i32
  }
  func.func @transform_5(%arg0: i32, %arg1: i32) -> (i32, i32) {
    %c0_i32 = arith.constant 0 : i32
    %c0_i32_0 = arith.constant 0 : i32
    %c0_i32_1 = arith.constant 0 : i32
    return %c0_i32, %c0_i32_0 : i32, i32
  }
  func.func @transform_6(%arg0: i32, %arg1: i32) -> (i32, i32) {
    %c0_i32 = arith.constant 0 : i32
    %c0_i32_0 = arith.constant 0 : i32
    %c0_i32_1 = arith.constant 0 : i32
    return %c0_i32, %c0_i32_0 : i32, i32
  }
  func.func @transform_7(%arg0: i32, %arg1: i32) -> (i32, i32) {
    %c0_i32 = arith.constant 0 : i32
    %c0_i32_0 = arith.constant 0 : i32
    return %arg0, %c0_i32 : i32, i32
  }
}

</mosaic_0001>

<llo_original>
// kernel: tpu_custom_call.1
$region0: #{tpu_custom_call.1}
  #allocation0 [shape = 'u32[]', space=smem, size = 0x4, offset = 0x4, fixed_abs, tag = 'smem constant byte address 0x4 - core index']
  #allocation1 [shape = 'u32[72,128]{1,0:T(1,128)}', space=vmem, size = 0x9000, scoped, tag = 'internal scratch']
  #allocation2 [shape = 'f32[16,128]{1,0:T(8,128)}', space=vmem, size = 0x2000, scoped, tag = 'scratch operand']
  %s0 = inlined_call_operand.hbm [shape: bf16[32,128], index: 0, kind: input, shape index: {}]
  %s1 = inlined_call_operand.hbm [shape: bf16[32,128], index: 1, kind: input, shape index: {}]
  %s2 = inlined_call_operand.hbm [shape: bf16[128,128], index: 2, kind: input, shape index: {}]
  %s3 = inlined_call_operand.hbm [shape: bf16[128,128], index: 3, kind: input, shape index: {}]
  %s4 = inlined_call_operand.vmem [shape: f32[1,128], index: 4, kind: input, shape index: {}]
  %s5 = inlined_call_operand.hbm [shape: bf16[128,128], index: 5, kind: input, shape index: {}]
  %s6 = inlined_call_operand.vmem [shape: f32[1,128], index: 6, kind: input, shape index: {}]
  %s7 = inlined_call_operand.hbm [shape: f32[32,128], index: 7, kind: output, shape index: {}]
  %s8 = sld [smem:[#allocation0]]
  $region89: #{tpu_custom_call.1} parent=0
    _
  %s10 = ssub.s32 1, %s8
  %s11 = scalar_select 0, %s10, %s8
  $region1: #{tpu_custom_call.1} parent=0
    #allocation3 [shape = 'u8[8192]{0}', space=vmem, size = 0x2000, scoped, tag = 'input window, operand 0']
    #allocation4 [shape = 's32[2]{0}', space=sflag, size = 0x8, scoped, tag = 'scoped memory for tpu_custom_call.1']
    #allocation5 [shape = 's32[2]{0}', space=sflag, size = 0x8, scoped, tag = 'scoped memory for tpu_custom_call.1']
    #allocation6 [shape = 'u8[8192]{0}', space=vmem, size = 0x2000, scoped, tag = 'input window, operand 1']
    #allocation7 [shape = 's32[2]{0}', space=sflag, size = 0x8, scoped, tag = 'scoped memory for tpu_custom_call.1']
    #allocation8 [shape = 'u8[32768]{0}', space=vmem, size = 0x8000, scoped, tag = 'input window, operand 2, single buffered']
    #allocation9 [shape = 'u8[32768]{0}', space=vmem, size = 0x8000, scoped, tag = 'input window, operand 3, single buffered']
    #allocation10 [shape = 's32[1]{0}', space=sflag, size = 0x4, scoped, tag = 'scoped memory for tpu_custom_call.1']
    #allocation11 [shape = 'u8[32768]{0}', space=vmem, size = 0x8000, scoped, tag = 'input window, operand 5, single buffered']
    #allocation12 [shape = 'u8[16384]{0}', space=vmem, size = 0x4000, scoped, tag = 'output window, operand 0']
    %12 = vsyncpa [#allocation4], 0
    %s13 = scalar_lea.sflag [#allocation4], 1
    %14 = vsyncpa %s13, 0
    %15 = vsyncpa [#allocation7], 0
    %s16 = scalar_lea.sflag [#allocation7], 1
    %17 = vsyncpa %s16, 0
    %18 = vsyncpa [#allocation10], 0
    %19 = vsyncpa [#allocation5], 0
    %s20 = scalar_lea.sflag [#allocation5], 1
    %21 = vsyncpa %s20, 0
    loop: start=0, step=1, limit=4
    $region2: #{tpu_custom_call.1} parent=1 // loop_pre_header
      _
    $region3: #{tpu_custom_call.1} parent=1 // loop_header
      %s23 = sphi 0, %s27
      %p24 = scmp.ge.s32.totalorder %s23, 4
      %s30 = sphi 0, %s42
      %s31 = sphi 0, %s38
      %s32 = sphi 0, %s30
      %s33 = sphi 0, %s31
      %s34 = sphi 0, %s32
      %s35 = sphi 0, %s33
      %s47 = sphi 0, %s49
      %s50 = sphi 0, %s47
      %s51 = sphi 0, %s50
      %s67 = sphi 0, %s51
      %s73 = sphi 0, %s75
      %s76 = sphi 0, %s73
      %s77 = sphi 0, %s76
      %s93 = sphi 0, %s77
      %s99 = sphi 0, %s101
      %s102 = sphi 0, %s99
      %s103 = sphi 0, %s102
      %s119 = sphi 0, %s103
      %s123 = sphi 0, %s123
      %s125 = sphi 0, %s123
      %s126 = sphi 0, %s125
      %s140 = sphi 0, %s126
      %s144 = sphi 0, %s144
      %s146 = sphi 0, %s144
      %s147 = sphi 0, %s146
      %s161 = sphi 0, %s147
      %s165 = sphi 0, %s165
      %s167 = sphi 0, %s165
      %s168 = sphi 0, %s167
      %s182 = sphi 0, %s168
      %s186 = sphi 0, %s186
      %s188 = sphi 0, %s186
      %s189 = sphi 0, %s188
      %s203 = sphi 0, %s189
      %s209 = sphi 0, %s211
      %s212 = sphi 0, %s209
      %s213 = sphi 0, %s212
      %s229 = sphi 0, %s213
    $region4: #{tpu_custom_call.1} parent=1 // loop_header_branch
      %26 = sbr.rel (%p24) target = $region8
    $region5: #{tpu_custom_call.1} parent=1 // loop_body
      %s28 = ssub.s32 %s23, 1
      %s29 = ssub.s32 %s23, 2
      %s36 = sadd.s32 1, %s31
      %p37 = scmp.ge.s32.totalorder %s36, 1
      %s38 = scalar_select %p37, 0, %s36
      %s39 = sadd.s32 1, %s30
      %s40 = scalar_select %p37, %s39, %s30
      %p41 = scmp.ge.s32.totalorder %s40, 2
      %s42 = scalar_select %p41, 0, %s40
      %s43 = ssub.s32 %s30, %s42
      %s44 = ssub.s32 %s31, %s38
      %s45 = sor.u32 %s43, %s44
      %p46 = scmp.eq.s32.totalorder %s45, 0
      %s48 = sadd.s32 %s47, 1
      %s49 = scalar_select %p46, %s47, %s48
      %p52 = pneg %p46
      %p53 = scmp.eq.s32.totalorder %s23, 1
      %p54 = por %p52, %p53
      %p55 = scmp.ne.s32.totalorder %s47, %s50
      %p56 = scmp.eq.s32.totalorder %s23, 0
      %p57 = por %p55, %p56
      %p58 = scmp.ne.s32.totalorder %s47, %s50
      %p59 = scmp.eq.s32.totalorder %s28, 1
      %p60 = por %p58, %p59
      %p61 = scmp.ne.s32.totalorder %s50, %s51
      %p62 = scmp.eq.s32.totalorder %s28, 0
      %p63 = por %p61, %p62
      %p64 = scmp.ne.s32.totalorder %s50, %s51
      %p65 = scmp.eq.s32.totalorder %s29, 1
      %p66 = por %p64, %p65
      %p68 = scmp.ne.s32.totalorder %s51, %s67
      %p69 = scmp.eq.s32.totalorder %s29, 0
      %p70 = por %p68, %p69
      %s71 = ssub.s32 %s30, %s42
      %p72 = scmp.eq.s32.totalorder %s71, 0
      %s74 = sadd.s32 %s73, 1
      %s75 = scalar_select %p72, %s73, %s74
      %p78 = pneg %p72
      %p79 = scmp.eq.s32.totalorder %s23, 1
      %p80 = por %p78, %p79
      %p81 = scmp.ne.s32.totalorder %s73, %s76
      %p82 = scmp.eq.s32.totalorder %s23, 0
      %p83 = por %p81, %p82
      %p84 = scmp.ne.s32.totalorder %s73, %s76
      %p85 = scmp.eq.s32.totalorder %s28, 1
      %p86 = por %p84, %p85
      %p87 = scmp.ne.s32.totalorder %s76, %s77
      %p88 = scmp.eq.s32.totalorder %s28, 0
      %p89 = por %p87, %p88
      %p90 = scmp.ne.s32.totalorder %s76, %s77
      %p91 = scmp.eq.s32.totalorder %s29, 1
      %p92 = por %p90, %p91
      %p94 = scmp.ne.s32.totalorder %s77, %s93
      %p95 = scmp.eq.s32.totalorder %s29, 0
      %p96 = por %p94, %p95
      %s97 = ssub.s32 %s31, %s38
      %p98 = scmp.eq.s32.totalorder %s97, 0
      %s100 = sadd.s32 %s99, 1
      %s101 = scalar_select %p98, %s99, %s100
      %p104 = pneg %p98
      %p105 = scmp.eq.s32.totalorder %s23, 1
      %p106 = por %p104, %p105
      %p107 = scmp.ne.s32.totalorder %s99, %s102
      %p108 = scmp.eq.s32.totalorder %s23, 0
      %p109 = por %p107, %p108
      %p110 = scmp.ne.s32.totalorder %s99, %s102
      %p111 = scmp.eq.s32.totalorder %s28, 1
      %p112 = por %p110, %p111
      %p113 = scmp.ne.s32.totalorder %s102, %s103
      %p114 = scmp.eq.s32.totalorder %s28, 0
      %p115 = por %p113, %p114
      %p116 = scmp.ne.s32.totalorder %s102, %s103
      %p117 = scmp.eq.s32.totalorder %s29, 1
      %p118 = por %p116, %p117
      %p120 = scmp.ne.s32.totalorder %s103, %s119
      %p121 = scmp.eq.s32.totalorder %s29, 0
      %p122 = por %p120, %p121
      %s124 = sadd.s32 %s123, 1
      %p127 = scmp.eq.s32.totalorder %s23, 1
      %p128 = scmp.ne.s32.totalorder %s123, %s125
      %p129 = scmp.eq.s32.totalorder %s23, 0
      %p130 = por %p128, %p129
      %p131 = scmp.ne.s32.totalorder %s123, %s125
      %p132 = scmp.eq.s32.totalorder %s28, 1
      %p133 = por %p131, %p132
      %p134 = scmp.ne.s32.totalorder %s125, %s126
      %p135 = scmp.eq.s32.totalorder %s28, 0
      %p136 = por %p134, %p135
      %p137 = scmp.ne.s32.totalorder %s125, %s126
      %p138 = scmp.eq.s32.totalorder %s29, 1
      %p139 = por %p137, %p138
      %p141 = scmp.ne.s32.totalorder %s126, %s140
      %p142 = scmp.eq.s32.totalorder %s29, 0
      %p143 = por %p141, %p142
      %s145 = sadd.s32 %s144, 1
      %p148 = scmp.eq.s32.totalorder %s23, 1
      %p149 = scmp.ne.s32.totalorder %s144, %s146
      %p150 = scmp.eq.s32.totalorder %s23, 0
      %p151 = por %p149, %p150
      %p152 = scmp.ne.s32.totalorder %s144, %s146
      %p153 = scmp.eq.s32.totalorder %s28, 1
      %p154 = por %p152, %p153
      %p155 = scmp.ne.s32.totalorder %s146, %s147
      %p156 = scmp.eq.s32.totalorder %s28, 0
      %p157 = por %p155, %p156
      %p158 = scmp.ne.s32.totalorder %s146, %s147
      %p159 = scmp.eq.s32.totalorder %s29, 1
      %p160 = por %p158, %p159
      %p162 = scmp.ne.s32.totalorder %s147, %s161
      %p163 = scmp.eq.s32.totalorder %s29, 0
      %p164 = por %p162, %p163
      %s166 = sadd.s32 %s165, 1
      %p169 = scmp.eq.s32.totalorder %s23, 1
      %p170 = scmp.ne.s32.totalorder %s165, %s167
      %p171 = scmp.eq.s32.totalorder %s23, 0
      %p172 = por %p170, %p171
      %p173 = scmp.ne.s32.totalorder %s165, %s167
      %p174 = scmp.eq.s32.totalorder %s28, 1
      %p175 = por %p173, %p174
      %p176 = scmp.ne.s32.totalorder %s167, %s168
      %p177 = scmp.eq.s32.totalorder %s28, 0
      %p178 = por %p176, %p177
      %p179 = scmp.ne.s32.totalorder %s167, %s168
      %p180 = scmp.eq.s32.totalorder %s29, 1
      %p181 = por %p179, %p180
      %p183 = scmp.ne.s32.totalorder %s168, %s182
      %p184 = scmp.eq.s32.totalorder %s29, 0
      %p185 = por %p183, %p184
      %s187 = sadd.s32 %s186, 1
      %p190 = scmp.eq.s32.totalorder %s23, 1
      %p191 = scmp.ne.s32.totalorder %s186, %s188
      %p192 = scmp.eq.s32.totalorder %s23, 0
      %p193 = por %p191, %p192
      %p194 = scmp.ne.s32.totalorder %s186, %s188
      %p195 = scmp.eq.s32.totalorder %s28, 1
      %p196 = por %p194, %p195
      %p197 = scmp.ne.s32.totalorder %s188, %s189
      %p198 = scmp.eq.s32.totalorder %s28, 0
      %p199 = por %p197, %p198
      %p200 = scmp.ne.s32.totalorder %s188, %s189
      %p201 = scmp.eq.s32.totalorder %s29, 1
      %p202 = por %p200, %p201
      %p204 = scmp.ne.s32.totalorder %s189, %s203
      %p205 = scmp.eq.s32.totalorder %s29, 0
      %p206 = por %p204, %p205
      %s207 = ssub.s32 %s30, %s42
      %p208 = scmp.eq.s32.totalorder %s207, 0
      %s210 = sadd.s32 %s209, 1
      %s211 = scalar_select %p208, %s209, %s210
      %p214 = pneg %p208
      %p215 = scmp.eq.s32.totalorder %s23, 1
      %p216 = por %p214, %p215
      %p217 = scmp.ne.s32.totalorder %s209, %s212
      %p218 = scmp.eq.s32.totalorder %s23, 0
      %p219 = por %p217, %p218
      %p220 = scmp.ne.s32.totalorder %s209, %s212
      %p221 = scmp.eq.s32.totalorder %s28, 1
      %p222 = por %p220, %p221
      %p223 = scmp.ne.s32.totalorder %s212, %s213
      %p224 = scmp.eq.s32.totalorder %s28, 0
      %p225 = por %p223, %p224
      %p226 = scmp.ne.s32.totalorder %s212, %s213
      %p227 = scmp.eq.s32.totalorder %s29, 1
      %p228 = por %p226, %p227
      %p230 = scmp.ne.s32.totalorder %s213, %s229
      %p231 = scmp.eq.s32.totalorder %s29, 0
      %p232 = por %p230, %p231
      %p233 = scmp.le.s32.totalorder 1, %s23
      %p234 = scmp.lt.s32.totalorder %s23, 3
      %p235 = pnand %p233, %p234
      %p236 = pneg %p235
      // Predicated region
      $region9: #{tpu_custom_call.1} parent=5 // pred_check
        _
      $region10: #{tpu_custom_call.1} parent=5 // pred_check_branch
        %238 = sbr.rel (%p235) target = $region12
      $region11: #{tpu_custom_call.1} parent=5 // pred_region
        %s239 = ssub.s32 %s23, 1
        // Predicated region
        $region13: #{tpu_custom_call.1} parent=11 // pred_check
          %p240 = pneg %p115
        $region14: #{tpu_custom_call.1} parent=11 // pred_check_branch
          %242 = sbr.rel (%p240) target = $region16
        $region15: #{tpu_custom_call.1} parent=11 // pred_region
          %s243 = smul.u32 16, %s33
          %245 = vsyncadd [#allocation7], 0
          %s246 = smul.addr %s243, 4
          %s247 = scalar_lea.hbm %s2, %s246
          %s248 = sshll.u32 %s247, 4
          %s249 = int_to_ptr.hbm [resolvable:$true] %s248
          %s250 = sshll.u32 [#allocation8], 4
          %s251 = int_to_ptr.vmem [resolvable:$true] %s250
          %256 = dma.hbm_to_vmem [thread:$0]  %s249, 1024, %s251, [#allocation7], 64, 64, 4
        $region16: #{tpu_custom_call.1} parent=11 // pred_fallthru
          _
        // Predicated region
        $region17: #{tpu_custom_call.1} parent=11 // pred_check
          %p257 = pneg %p136
        $region18: #{tpu_custom_call.1} parent=11 // pred_check_branch
          %259 = sbr.rel (%p257) target = $region20
        $region19: #{tpu_custom_call.1} parent=11 // pred_region
          %261 = vsyncadd [#allocation10], 0
          %s262 = sshll.u32 %s3, 4
          %s263 = int_to_ptr.hbm [resolvable:$true] %s262
          %s264 = sshll.u32 [#allocation9], 4
          %s265 = int_to_ptr.vmem [resolvable:$true] %s264
          %270 = dma.hbm_to_vmem [thread:$0]  %s263, 1024, %s265, [#allocation10], 64, 64, 4
        $region20: #{tpu_custom_call.1} parent=11 // pred_fallthru
          _
        // Predicated region
        $region21: #{tpu_custom_call.1} parent=11 // pred_check
          %p271 = pneg %p157
        $region22: #{tpu_custom_call.1} parent=11 // pred_check_branch
          %273 = sbr.rel (%p271) target = $region24
        $region23: #{tpu_custom_call.1} parent=11 // pred_region
          _
        $region24: #{tpu_custom_call.1} parent=11 // pred_fallthru
          _
        // Predicated region
        $region25: #{tpu_custom_call.1} parent=11 // pred_check
          %p274 = pneg %p178
        $region26: #{tpu_custom_call.1} parent=11 // pred_check_branch
          %276 = sbr.rel (%p274) target = $region28
        $region27: #{tpu_custom_call.1} parent=11 // pred_region
          %278 = vsyncadd [#allocation10], 0
          %s279 = sshll.u32 %s5, 4
          %s280 = int_to_ptr.hbm [resolvable:$true] %s279
          %s281 = sshll.u32 [#allocation11], 4
          %s282 = int_to_ptr.vmem [resolvable:$true] %s281
          %287 = dma.hbm_to_vmem [thread:$0]  %s280, 1024, %s282, [#allocation10], 64, 64, 4
        $region28: #{tpu_custom_call.1} parent=11 // pred_fallthru
          _
        // Predicated region
        $region29: #{tpu_custom_call.1} parent=11 // pred_check
          %p288 = pneg %p199
        $region30: #{tpu_custom_call.1} parent=11 // pred_check_branch
          %290 = sbr.rel (%p288) target = $region32
        $region31: #{tpu_custom_call.1} parent=11 // pred_region
          _
        $region32: #{tpu_custom_call.1} parent=11 // pred_fallthru
          _
      $region12: #{tpu_custom_call.1} parent=5 // pred_fallthru
        _
      %p291 = scmp.lt.s32.totalorder %s23, 2
      // Predicated region
      $region33: #{tpu_custom_call.1} parent=5 // pred_check
        %p292 = pneg %p291
      $region34: #{tpu_custom_call.1} parent=5 // pred_check_branch
        %294 = sbr.rel (%p292) target = $region36
      $region35: #{tpu_custom_call.1} parent=5 // pred_region
        // Predicated region
        $region37: #{tpu_custom_call.1} parent=35 // pred_check
          %p295 = pneg %p57
        $region38: #{tpu_custom_call.1} parent=35 // pred_check_branch
          %297 = sbr.rel (%p295) target = $region40
        $region39: #{tpu_custom_call.1} parent=35 // pred_region
          %s298 = sand.u32 %s47, 1
          %s299 = scalar_lea.sflag [#allocation4], %s298
          %s300 = sand.u32 %s47, 1
          %s301 = smul.addr %s300, 8
          %s302 = scalar_lea.vmem [#allocation3], %s301
          %s303 = smul.u32 2, %s30
          %305 = vsyncadd %s299, 0
          %s306 = sadd.s32 %s31, %s303
          %s307 = smul.addr %s306, 4
          %s308 = scalar_lea.hbm %s0, %s307
          %s309 = sshll.u32 %s308, 4
          %s310 = int_to_ptr.hbm [resolvable:$true] %s309
          %s311 = sshll.u32 %s302, 4
          %s312 = int_to_ptr.vmem [resolvable:$true] %s311
          %317 = dma.hbm_to_vmem [thread:$0]  %s310, 128, %s312, %s299, 64, 64, 4
        $region40: #{tpu_custom_call.1} parent=35 // pred_fallthru
          _
        // Predicated region
        $region41: #{tpu_custom_call.1} parent=35 // pred_check
          %p318 = pneg %p83
        $region42: #{tpu_custom_call.1} parent=35 // pred_check_branch
          %320 = sbr.rel (%p318) target = $region44
        $region43: #{tpu_custom_call.1} parent=35 // pred_region
          %s321 = sand.u32 %s23, 1
          %s322 = scalar_lea.sflag [#allocation7], %s321
          %s323 = sand.u32 %s73, 1
          %s324 = smul.addr %s323, 8
          %s325 = scalar_lea.vmem [#allocation6], %s324
          %s326 = smul.u32 2, %s30
          %328 = vsyncadd %s322, 0
          %s329 = smul.addr %s326, 4
          %s330 = scalar_lea.hbm %s1, %s329
          %s331 = sshll.u32 %s330, 4
          %s332 = int_to_ptr.hbm [resolvable:$true] %s331
          %s333 = sshll.u32 %s325, 4
          %s334 = int_to_ptr.vmem [resolvable:$true] %s333
          %339 = dma.hbm_to_vmem [thread:$0]  %s332, 128, %s334, %s322, 64, 64, 4
        $region44: #{tpu_custom_call.1} parent=35 // pred_fallthru
          _
      $region36: #{tpu_custom_call.1} parent=5 // pred_fallthru
        _
      %p340 = scmp.le.s32.totalorder 1, %s23
      %p341 = scmp.lt.s32.totalorder %s23, 3
      %p342 = pnand %p340, %p341
      %p343 = pneg %p342
      // Predicated region
      $region45: #{tpu_custom_call.1} parent=5 // pred_check
        _
      $region46: #{tpu_custom_call.1} parent=5 // pred_check_branch
        %345 = sbr.rel (%p342) target = $region48
      $region47: #{tpu_custom_call.1} parent=5 // pred_region
        %s346 = ssub.s32 %s23, 1
        %s347 = sand.u32 %s50, 1
        %s348 = scalar_lea.sflag [#allocation4], %s347
        %s349 = sand.u32 %s50, 1
        %s350 = smul.addr %s349, 8
        %s351 = scalar_lea.vmem [#allocation3], %s350
        // Predicated region
        $region49: #{tpu_custom_call.1} parent=47 // pred_check
          %p352 = pneg %p63
        $region50: #{tpu_custom_call.1} parent=47 // pred_check_branch
          %354 = sbr.rel (%p352) target = $region52
        $region51: #{tpu_custom_call.1} parent=47 // pred_region
          %356 = dma.done %s348, 128
        $region52: #{tpu_custom_call.1} parent=47 // pred_fallthru
          _
        %s357 = sand.u32 %s28, 1
        %s358 = scalar_lea.sflag [#allocation7], %s357
        %s359 = sand.u32 %s76, 1
        %s360 = smul.addr %s359, 8
        %s361 = scalar_lea.vmem [#allocation6], %s360
        // Predicated region
        $region53: #{tpu_custom_call.1} parent=47 // pred_check
          %p362 = pneg %p89
        $region54: #{tpu_custom_call.1} parent=47 // pred_check_branch
          %364 = sbr.rel (%p362) target = $region56
        $region55: #{tpu_custom_call.1} parent=47 // pred_region
          %366 = dma.done %s358, 128
        $region56: #{tpu_custom_call.1} parent=47 // pred_fallthru
          _
        // Predicated region
        $region57: #{tpu_custom_call.1} parent=47 // pred_check
          %p367 = pneg %p115
        $region58: #{tpu_custom_call.1} parent=47 // pred_check_branch
          %369 = sbr.rel (%p367) target = $region60
        $region59: #{tpu_custom_call.1} parent=47 // pred_region
          %371 = dma.done [#allocation7], 1024
        $region60: #{tpu_custom_call.1} parent=47 // pred_fallthru
          _
        // Predicated region
        $region61: #{tpu_custom_call.1} parent=47 // pred_check
          %p372 = pneg %p136
        $region62: #{tpu_custom_call.1} parent=47 // pred_check_branch
          %374 = sbr.rel (%p372) target = $region64
        $region63: #{tpu_custom_call.1} parent=47 // pred_region
          %376 = dma.done [#allocation10], 1024
        $region64: #{tpu_custom_call.1} parent=47 // pred_fallthru
          _
        // Predicated region
        $region65: #{tpu_custom_call.1} parent=47 // pred_check
          %p377 = pneg %p178
        $region66: #{tpu_custom_call.1} parent=47 // pred_check_branch
          %379 = sbr.rel (%p377) target = $region68
        $region67: #{tpu_custom_call.1} parent=47 // pred_region
          %381 = dma.done [#allocation10], 1024
        $region68: #{tpu_custom_call.1} parent=47 // pred_fallthru
          _
        %s382 = sand.u32 %s50, 1
        %s383 = scalar_lea.sflag [#allocation4], %s382
        %s384 = sand.u32 %s50, 1
        %s385 = smul.addr %s384, 8
        %s386 = scalar_lea.vmem [#allocation3], %s385
        %p387 = pneg %p63
        %p388 = pneg %p60
        %s389 = sand.u32 %s28, 1
        %s390 = scalar_lea.sflag [#allocation7], %s389
        %s391 = sand.u32 %s76, 1
        %s392 = smul.addr %s391, 8
        %s393 = scalar_lea.vmem [#allocation6], %s392
        %p394 = pneg %p89
        %p395 = pneg %p86
        %p396 = pneg %p115
        %p397 = pneg %p112
        %p398 = pneg %p136
        %p399 = pneg %p133
        %p400 = pneg %p157
        %p401 = pneg %p154
        %p402 = pneg %p178
        %p403 = pneg %p175
        %p404 = pneg %p199
        %p405 = pneg %p196
        %p406 = pneg %p225
        %p407 = pneg %p222
        %s408 = sand.u32 %s212, 1
        %s409 = scalar_lea.sflag [#allocation5], %s408
        %s410 = sand.u32 %s212, 1
        %s411 = smul.addr %s410, 16
        %s412 = scalar_lea.vmem [#allocation12], %s411
        %s413 = smul.u32 2, %s32
        %s414 = smul.u32 2, %s32
        %s415 = smul.u32 16, %s33
        %s416 = smul.u32 2, %s32
        %v417 = vld [vmem:[%s351] sm:$0xf]
        %v418 = vld [vmem:[%s351 + $0x4] sm:$0xf]
        %p419 = scmp.eq.s32.totalorder %s33, 0
        // Predicated region
        $region69: #{tpu_custom_call.1} parent=47 // pred_check
          %p420 = pneg %p419
        $region70: #{tpu_custom_call.1} parent=47 // pred_check_branch
          %422 = sbr.rel (%p420) target = $region72
        $region71: #{tpu_custom_call.1} parent=47 // pred_region
          %v423 = vld [vmem:[%s361] sm:$0xf]
          %v424 = vld [vmem:[%s361 + $0x4] sm:$0xf]
          %v425 = vld [vmem:[#allocation9] sm:$0xf]
          %v426 = vld [vmem:[#allocation9 + $0x4] sm:$0xf]
          %v427 = vld [vmem:[#allocation9 + $0x8] sm:$0xf]
          %v428 = vld [vmem:[#allocation9 + $0xc] sm:$0xf]
          %v429 = vld [vmem:[#allocation9 + $0x10] sm:$0xf]
          %v430 = vld [vmem:[#allocation9 + $0x14] sm:$0xf]
          %v431 = vld [vmem:[#allocation9 + $0x18] sm:$0xf]
          %v432 = vld [vmem:[#allocation9 + $0x1c] sm:$0xf]
          %v433 = vld [vmem:[#allocation9 + $0x20] sm:$0xf]
          %v434 = vld [vmem:[#allocation9 + $0x24] sm:$0xf]
          %v435 = vld [vmem:[#allocation9 + $0x28] sm:$0xf]
          %v436 = vld [vmem:[#allocation9 + $0x2c] sm:$0xf]
          %v437 = vld [vmem:[#allocation9 + $0x30] sm:$0xf]
          %v438 = vld [vmem:[#allocation9 + $0x34] sm:$0xf]
          %v439 = vld [vmem:[#allocation9 + $0x38] sm:$0xf]
          %v440 = vld [vmem:[#allocation9 + $0x3c] sm:$0xf]
          %v441 = vld [vmem:[%s4] sm:$0x1]
          %v443 = vperm.slane %v441, 0
          %v447 = vunpack.c.l.b16 %v423
          %v448 = vunpack.c.l.b16 %v424
          %v449 = vpack.c.b16 %v448, %v447
          %v467 = vunpack.c.l.b16 %v425
          %v468 = vunpack.c.l.b16 %v426
          %v469 = vunpack.c.l.b16 %v427
          %v470 = vunpack.c.l.b16 %v428
          %v471 = vunpack.c.l.b16 %v429
          %v472 = vunpack.c.l.b16 %v430
          %v473 = vunpack.c.l.b16 %v431
          %v474 = vunpack.c.l.b16 %v432
          %v475 = vunpack.c.l.b16 %v433
          %v476 = vunpack.c.l.b16 %v434
          %v477 = vunpack.c.l.b16 %v435
          %v478 = vunpack.c.l.b16 %v436
          %v479 = vunpack.c.l.b16 %v437
          %v480 = vunpack.c.l.b16 %v438
          %v481 = vunpack.c.l.b16 %v439
          %v482 = vunpack.c.l.b16 %v440
          %v483 = vpack.c.b16 %v468, %v467
          %v484 = vpack.c.b16 %v470, %v469
          %v485 = vpack.c.b16 %v472, %v471
          %v486 = vpack.c.b16 %v474, %v473
          %v487 = vpack.c.b16 %v476, %v475
          %v488 = vpack.c.b16 %v478, %v477
          %v489 = vpack.c.b16 %v480, %v479
          %v490 = vpack.c.b16 %v482, %v481
          %499 = vmatpush.bf16.msra.mxu0 %v490
          %500 = vmatpush.bf16.msra.mxu0 %v489
          %501 = vmatpush.bf16.msra.mxu0 %v488
          %502 = vmatpush.bf16.msra.mxu0 %v487
          %503 = vmatpush.bf16.msra.mxu0 %v486
          %504 = vmatpush.bf16.msra.mxu0 %v485
          %505 = vmatpush.bf16.msra.mxu0 %v484
          %506 = vmatpush.bf16.msra.mxu0 %v483
          %507 = vmatmul.bf16.gmra.mxu0 %v449
          %v508 = vpop.f32.mrf.mxu0
          %v509 = vadd.f32 %v443, %v508
          %v510 = vpop.f32.mrf.mxu0
          %v511 = vadd.f32 %v443, %v510
          %512 = vdwg.mxu0
          %513 = vst [vmem:[#allocation2] sm:$0xff] %v509
          %514 = vst [vmem:[#allocation2 + $0x8] sm:$0xff] %v511
        $region72: #{tpu_custom_call.1} parent=47 // pred_fallthru
          _
        %v515 = vld [vmem:[#allocation2] sm:$0xff]
        %v516 = vld [vmem:[#allocation2 + $0x8] sm:$0xff]
        %v517 = vld [vmem:[#allocation8] sm:$0xf]
        %v518 = vld [vmem:[#allocation8 + $0x4] sm:$0xf]
        %v519 = vld [vmem:[#allocation8 + $0x8] sm:$0xf]
        %v520 = vld [vmem:[#allocation8 + $0xc] sm:$0xf]
        %v521 = vld [vmem:[#allocation8 + $0x10] sm:$0xf]
        %v522 = vld [vmem:[#allocation8 + $0x14] sm:$0xf]
        %v523 = vld [vmem:[#allocation8 + $0x18] sm:$0xf]
        %v524 = vld [vmem:[#allocation8 + $0x1c] sm:$0xf]
        %v525 = vld [vmem:[#allocation8 + $0x20] sm:$0xf]
        %v526 = vld [vmem:[#allocation8 + $0x24] sm:$0xf]
        %v527 = vld [vmem:[#allocation8 + $0x28] sm:$0xf]
        %v528 = vld [vmem:[#allocation8 + $0x2c] sm:$0xf]
        %v529 = vld [vmem:[#allocation8 + $0x30] sm:$0xf]
        %v530 = vld [vmem:[#allocation8 + $0x34] sm:$0xf]
        %v531 = vld [vmem:[#allocation8 + $0x38] sm:$0xf]
        %v532 = vld [vmem:[#allocation8 + $0x3c] sm:$0xf]
        %v535 = vunpack.c.l.b16 %v417
        %v536 = vunpack.c.l.b16 %v418
        %v537 = vpack.c.b16 %v536, %v535
        %v555 = vunpack.c.l.b16 %v517
        %v556 = vunpack.c.l.b16 %v518
        %v557 = vunpack.c.l.b16 %v519
        %v558 = vunpack.c.l.b16 %v520
        %v559 = vunpack.c.l.b16 %v521
        %v560 = vunpack.c.l.b16 %v522
        %v561 = vunpack.c.l.b16 %v523
        %v562 = vunpack.c.l.b16 %v524
        %v563 = vunpack.c.l.b16 %v525
        %v564 = vunpack.c.l.b16 %v526
        %v565 = vunpack.c.l.b16 %v527
        %v566 = vunpack.c.l.b16 %v528
        %v567 = vunpack.c.l.b16 %v529
        %v568 = vunpack.c.l.b16 %v530
        %v569 = vunpack.c.l.b16 %v531
        %v570 = vunpack.c.l.b16 %v532
        %v571 = vpack.c.b16 %v556, %v555
        %v572 = vpack.c.b16 %v558, %v557
        %v573 = vpack.c.b16 %v560, %v559
        %v574 = vpack.c.b16 %v562, %v561
        %v575 = vpack.c.b16 %v564, %v563
        %v576 = vpack.c.b16 %v566, %v565
        %v577 = vpack.c.b16 %v568, %v567
        %v578 = vpack.c.b16 %v570, %v569
        %587 = vmatpush.bf16.msra.mxu0 %v578
        %588 = vmatpush.bf16.msra.mxu0 %v577
        %589 = vmatpush.bf16.msra.mxu0 %v576
        %590 = vmatpush.bf16.msra.mxu0 %v575
        %591 = vmatpush.bf16.msra.mxu0 %v574
        %592 = vmatpush.bf16.msra.mxu0 %v573
        %593 = vmatpush.bf16.msra.mxu0 %v572
        %594 = vmatpush.bf16.msra.mxu0 %v571
        %595 = vmatmul.bf16.gmra.mxu0 %v537
        %v596 = vpop.f32.mrf.mxu0
        %v597 = vadd.f32 0.0, %v596
        %v598 = vpop.f32.mrf.mxu0
        %v599 = vadd.f32 0.0, %v598
        %600 = vdwg.mxu0
        %v601 = vadd.f32 %v515, %v597
        %v602 = vadd.f32 %v516, %v599
        %603 = vst [vmem:[#allocation2] sm:$0xff] %v601
        %604 = vst [vmem:[#allocation2 + $0x8] sm:$0xff] %v602
        // Predicated region
        $region73: #{tpu_custom_call.1} parent=47 // pred_check
          %p605 = pneg %p419
        $region74: #{tpu_custom_call.1} parent=47 // pred_check_branch
          %607 = sbr.rel (%p605) target = $region76
        $region75: #{tpu_custom_call.1} parent=47 // pred_region
          %v608 = vld [vmem:[#allocation2] sm:$0xff]
          %v609 = vld [vmem:[#allocation2 + $0x8] sm:$0xff]
          %v610 = vtanh.pop %v608
          %v611 = vtanh.pop %v609
          %v612 = vld [vmem:[#allocation11] sm:$0xf]
          %v613 = vld [vmem:[#allocation11 + $0x4] sm:$0xf]
          %v614 = vld [vmem:[#allocation11 + $0x8] sm:$0xf]
          %v615 = vld [vmem:[#allocation11 + $0xc] sm:$0xf]
          %v616 = vld [vmem:[#allocation11 + $0x10] sm:$0xf]
          %v617 = vld [vmem:[#allocation11 + $0x14] sm:$0xf]
          %v618 = vld [vmem:[#allocation11 + $0x18] sm:$0xf]
          %v619 = vld [vmem:[#allocation11 + $0x1c] sm:$0xf]
          %v620 = vld [vmem:[#allocation11 + $0x20] sm:$0xf]
          %v621 = vld [vmem:[#allocation11 + $0x24] sm:$0xf]
          %v622 = vld [vmem:[#allocation11 + $0x28] sm:$0xf]
          %v623 = vld [vmem:[#allocation11 + $0x2c] sm:$0xf]
          %v624 = vld [vmem:[#allocation11 + $0x30] sm:$0xf]
          %v625 = vld [vmem:[#allocation11 + $0x34] sm:$0xf]
          %v626 = vld [vmem:[#allocation11 + $0x38] sm:$0xf]
          %v627 = vld [vmem:[#allocation11 + $0x3c] sm:$0xf]
          %v628 = vld [vmem:[%s6] sm:$0x1]
          %v629 = vpack.c.bf16 %v611, %v610
          %v631 = vperm.slane %v628, 0
          %v649 = vunpack.c.l.b16 %v612
          %v650 = vunpack.c.l.b16 %v613
          %v651 = vunpack.c.l.b16 %v614
          %v652 = vunpack.c.l.b16 %v615
          %v653 = vunpack.c.l.b16 %v616
          %v654 = vunpack.c.l.b16 %v617
          %v655 = vunpack.c.l.b16 %v618
          %v656 = vunpack.c.l.b16 %v619
          %v657 = vunpack.c.l.b16 %v620
          %v658 = vunpack.c.l.b16 %v621
          %v659 = vunpack.c.l.b16 %v622
          %v660 = vunpack.c.l.b16 %v623
          %v661 = vunpack.c.l.b16 %v624
          %v662 = vunpack.c.l.b16 %v625
          %v663 = vunpack.c.l.b16 %v626
          %v664 = vunpack.c.l.b16 %v627
          %v665 = vpack.c.b16 %v650, %v649
          %v666 = vpack.c.b16 %v652, %v651
          %v667 = vpack.c.b16 %v654, %v653
          %v668 = vpack.c.b16 %v656, %v655
          %v669 = vpack.c.b16 %v658, %v657
          %v670 = vpack.c.b16 %v660, %v659
          %v671 = vpack.c.b16 %v662, %v661
          %v672 = vpack.c.b16 %v664, %v663
          %681 = vmatpush.bf16.msra.mxu0 %v672
          %682 = vmatpush.bf16.msra.mxu0 %v671
          %683 = vmatpush.bf16.msra.mxu0 %v670
          %684 = vmatpush.bf16.msra.mxu0 %v669
          %685 = vmatpush.bf16.msra.mxu0 %v668
          %686 = vmatpush.bf16.msra.mxu0 %v667
          %687 = vmatpush.bf16.msra.mxu0 %v666
          %688 = vmatpush.bf16.msra.mxu0 %v665
          %689 = vmatmul.bf16.gmra.mxu0 %v629
          %v690 = vpop.f32.mrf.mxu0
          %v691 = vadd.f32 %v631, %v690
          %v692 = vpop.f32.mrf.mxu0
          %v693 = vadd.f32 %v631, %v692
          %694 = vdwg.mxu0
          %695 = vst [vmem:[%s412] sm:$0xff] %v691
          %696 = vst [vmem:[%s412 + $0x8] sm:$0xff] %v693
        $region76: #{tpu_custom_call.1} parent=47 // pred_fallthru
          _
        %s697 = sand.u32 %s212, 1
        %s698 = scalar_lea.sflag [#allocation5], %s697
        %s699 = sand.u32 %s212, 1
        %s700 = smul.addr %s699, 16
        %s701 = scalar_lea.vmem [#allocation12], %s700
        // Predicated region
        $region77: #{tpu_custom_call.1} parent=47 // pred_check
          %p702 = pneg %p222
        $region78: #{tpu_custom_call.1} parent=47 // pred_check_branch
          %704 = sbr.rel (%p702) target = $region80
        $region79: #{tpu_custom_call.1} parent=47 // pred_region
          %s705 = smul.u32 2, %s32
          %707 = vsyncadd %s698, 0
          %s708 = smul.addr %s705, 8
          %s709 = scalar_lea.hbm %s7, %s708
          %s710 = sshll.u32 %s701, 4
          %s711 = int_to_ptr.vmem [resolvable:$true] %s710
          %s712 = sshll.u32 %s709, 4
          %s713 = int_to_ptr.hbm [resolvable:$true] %s712
          %718 = dma.vmem_to_hbm [thread:$0]  %s711, 256, %s713, %s698, 128, 128, 8
        $region80: #{tpu_custom_call.1} parent=47 // pred_fallthru
          _
      $region48: #{tpu_custom_call.1} parent=5 // pred_fallthru
        _
      %p719 = scmp.le.s32.totalorder 2, %s23
      // Predicated region
      $region81: #{tpu_custom_call.1} parent=5 // pred_check
        %p720 = pneg %p719
      $region82: #{tpu_custom_call.1} parent=5 // pred_check_branch
        %722 = sbr.rel (%p720) target = $region84
      $region83: #{tpu_custom_call.1} parent=5 // pred_region
        %s723 = ssub.s32 %s23, 2
        // Predicated region
        $region85: #{tpu_custom_call.1} parent=83 // pred_check
          %p724 = pneg %p228
        $region86: #{tpu_custom_call.1} parent=83 // pred_check_branch
          %726 = sbr.rel (%p724) target = $region88
        $region87: #{tpu_custom_call.1} parent=83 // pred_region
          %s727 = sand.u32 %s213, 1
          %s728 = scalar_lea.sflag [#allocation5], %s727
          %s729 = sand.u32 %s213, 1
          %s730 = smul.addr %s729, 16
          %s731 = scalar_lea.vmem [#allocation12], %s730
          %733 = dma.done %s728, 256
        $region88: #{tpu_custom_call.1} parent=83 // pred_fallthru
          _
      $region84: #{tpu_custom_call.1} parent=5 // pred_fallthru
        _
    $region6: #{tpu_custom_call.1} parent=1 // loop_footer
      %s27 = sadd.s32 1, %s23
    $region7: #{tpu_custom_call.1} parent=1 // loop_footer_branch
      %22 = sbr.rel target = $region3
    $region8: #{tpu_custom_call.1} parent=1 // loop_exit
      _
    %734 = vsyncpa [#allocation4], 1
    %s735 = scalar_lea.sflag [#allocation4], 1
    %736 = vsyncpa %s735, 1
    %737 = vsyncpa [#allocation7], 1
    %s738 = scalar_lea.sflag [#allocation7], 1
    %739 = vsyncpa %s738, 1
    %740 = vsyncpa [#allocation10], 1
    %741 = vsyncpa [#allocation5], 1
    %s742 = scalar_lea.sflag [#allocation5], 1
    %743 = vsyncpa %s742, 1

// kernel: tpu_custom_call.1
$region0: #{tpu_custom_call.1}
  #allocation0 [shape = 'u32[]', space=smem, size = 0x4, offset = 0x4, fixed_abs, tag = 'smem constant byte address 0x4 - core index']
  #allocation1 [shape = 'u32[72,128]{1,0:T(1,128)}', space=vmem, size = 0x9000, scoped, tag = 'internal scratch']
  #allocation2 [shape = 'f32[16,128]{1,0:T(8,128)}', space=vmem, size = 0x2000, scoped, tag = 'scratch operand']
  %s0 = inlined_call_operand.hbm [shape: bf16[32,128], index: 0, kind: input, shape index: {}]
  %s1 = inlined_call_operand.hbm [shape: bf16[32,128], index: 1, kind: input, shape index: {}]
  %s2 = inlined_call_operand.hbm [shape: bf16[128,128], index: 2, kind: input, shape index: {}]
  %s3 = inlined_call_operand.hbm [shape: bf16[128,128], index: 3, kind: input, shape index: {}]
  %s4 = inlined_call_operand.vmem [shape: f32[1,128], index: 4, kind: input, shape index: {}]
  %s5 = inlined_call_operand.hbm [shape: bf16[128,128], index: 5, kind: input, shape index: {}]
  %s6 = inlined_call_operand.vmem [shape: f32[1,128], index: 6, kind: input, shape index: {}]
  %s7 = inlined_call_operand.hbm [shape: f32[32,128], index: 7, kind: output, shape index: {}]
  %s8 = sld [smem:[#allocation0]]
  $region89: #{tpu_custom_call.1} parent=0
    _
  %s10 = ssub.s32 1, %s8
  %s11 = scalar_select 0, %s10, %s8
  $region1: #{tpu_custom_call.1} parent=0
    #allocation3 [shape = 'u8[8192]{0}', space=vmem, size = 0x2000, scoped, tag = 'input window, operand 0']
    #allocation4 [shape = 's32[2]{0}', space=sflag, size = 0x8, scoped, tag = 'scoped memory for tpu_custom_call.1']
    #allocation5 [shape = 's32[2]{0}', space=sflag, size = 0x8, scoped, tag = 'scoped memory for tpu_custom_call.1']
    #allocation6 [shape = 'u8[8192]{0}', space=vmem, size = 0x2000, scoped, tag = 'input window, operand 1']
    #allocation7 [shape = 's32[2]{0}', space=sflag, size = 0x8, scoped, tag = 'scoped memory for tpu_custom_call.1']
    #allocation8 [shape = 'u8[32768]{0}', space=vmem, size = 0x8000, scoped, tag = 'input window, operand 2, single buffered']
    #allocation9 [shape = 'u8[32768]{0}', space=vmem, size = 0x8000, scoped, tag = 'input window, operand 3, single buffered']
    #allocation10 [shape = 's32[1]{0}', space=sflag, size = 0x4, scoped, tag = 'scoped memory for tpu_custom_call.1']
    #allocation11 [shape = 'u8[32768]{0}', space=vmem, size = 0x8000, scoped, tag = 'input window, operand 5, single buffered']
    #allocation12 [shape = 'u8[16384]{0}', space=vmem, size = 0x4000, scoped, tag = 'output window, operand 0']
    %12 = vsyncpa [#allocation4], 0
    %s13 = scalar_lea.sflag [#allocation4], 1
    %14 = vsyncpa %s13, 0
    %15 = vsyncpa [#allocation7], 0
    %s16 = scalar_lea.sflag [#allocation7], 1
    %17 = vsyncpa %s16, 0
    %18 = vsyncpa [#allocation10], 0
    %19 = vsyncpa [#allocation5], 0
    %s20 = scalar_lea.sflag [#allocation5], 1
    %21 = vsyncpa %s20, 0
    loop: start=0, step=1, limit=4
    $region2: #{tpu_custom_call.1} parent=1 // loop_pre_header
      _
    $region3: #{tpu_custom_call.1} parent=1 // loop_header
      %s23 = sphi 0, %s27
      %p24 = scmp.ge.s32.totalorder %s23, 4
      %s30 = sphi 0, %s42
      %s31 = sphi 0, %s38
      %s32 = sphi 0, %s30
      %s33 = sphi 0, %s31
      %s34 = sphi 0, %s32
      %s35 = sphi 0, %s33
      %s47 = sphi 0, %s49
      %s50 = sphi 0, %s47
      %s51 = sphi 0, %s50
      %s67 = sphi 0, %s51
      %s73 = sphi 0, %s75
      %s76 = sphi 0, %s73
      %s77 = sphi 0, %s76
      %s93 = sphi 0, %s77
      %s99 = sphi 0, %s101
      %s102 = sphi 0, %s99
      %s103 = sphi 0, %s102
      %s119 = sphi 0, %s103
      %s123 = sphi 0, %s123
      %s125 = sphi 0, %s123
      %s126 = sphi 0, %s125
      %s140 = sphi 0, %s126
      %s144 = sphi 0, %s144
      %s146 = sphi 0, %s144
      %s147 = sphi 0, %s146
      %s161 = sphi 0, %s147
      %s165 = sphi 0, %s165
      %s167 = sphi 0, %s165
      %s168 = sphi 0, %s167
      %s182 = sphi 0, %s168
      %s186 = sphi 0, %s186
      %s188 = sphi 0, %s186
      %s189 = sphi 0, %s188
      %s203 = sphi 0, %s189
      %s209 = sphi 0, %s211
      %s212 = sphi 0, %s209
      %s213 = sphi 0, %s212
      %s229 = sphi 0, %s213
    $region4: #{tpu_custom_call.1} parent=1 // loop_header_branch
      %26 = sbr.rel (%p24) target = $region8
    $region5: #{tpu_custom_call.1} parent=1 // loop_body
      %s28 = ssub.s32 %s23, 1
      %s29 = ssub.s32 %s23, 2
      %s36 = sadd.s32 1, %s31
      %p37 = scmp.ge.s32.totalorder %s36, 1
      %s38 = scalar_select %p37, 0, %s36
      %s39 = sadd.s32 1, %s30
      %s40 = scalar_select %p37, %s39, %s30
      %p41 = scmp.ge.s32.totalorder %s40, 2
      %s42 = scalar_select %p41, 0, %s40
      %s43 = ssub.s32 %s30, %s42
      %s44 = ssub.s32 %s31, %s38
      %s45 = sor.u32 %s43, %s44
      %p46 = scmp.eq.s32.totalorder %s45, 0
      %s48 = sadd.s32 %s47, 1
      %s49 = scalar_select %p46, %s47, %s48
      %p52 = pneg %p46
      %p53 = scmp.eq.s32.totalorder %s23, 1
      %p54 = por %p52, %p53
      %p55 = scmp.ne.s32.totalorder %s47, %s50
      %p56 = scmp.eq.s32.totalorder %s23, 0
      %p57 = por %p55, %p56
      %p58 = scmp.ne.s32.totalorder %s47, %s50
      %p59 = scmp.eq.s32.totalorder %s28, 1
      %p60 = por %p58, %p59
      %p61 = scmp.ne.s32.totalorder %s50, %s51
      %p62 = scmp.eq.s32.totalorder %s28, 0
      %p63 = por %p61, %p62
      %p64 = scmp.ne.s32.totalorder %s50, %s51
      %p65 = scmp.eq.s32.totalorder %s29, 1
      %p66 = por %p64, %p65
      %p68 = scmp.ne.s32.totalorder %s51, %s67
      %p69 = scmp.eq.s32.totalorder %s29, 0
      %p70 = por %p68, %p69
      %s71 = ssub.s32 %s30, %s42
      %p72 = scmp.eq.s32.totalorder %s71, 0
      %s74 = sadd.s32 %s73, 1
      %s75 = scalar_select %p72, %s73, %s74
      %p78 = pneg %p72
      %p79 = scmp.eq.s32.totalorder %s23, 1
      %p80 = por %p78, %p79
      %p81 = scmp.ne.s32.totalorder %s73, %s76
      %p82 = scmp.eq.s32.totalorder %s23, 0
      %p83 = por %p81, %p82
      %p84 = scmp.ne.s32.totalorder %s73, %s76
      %p85 = scmp.eq.s32.totalorder %s28, 1
      %p86 = por %p84, %p85
      %p87 = scmp.ne.s32.totalorder %s76, %s77
      %p88 = scmp.eq.s32.totalorder %s28, 0
      %p89 = por %p87, %p88
      %p90 = scmp.ne.s32.totalorder %s76, %s77
      %p91 = scmp.eq.s32.totalorder %s29, 1
      %p92 = por %p90, %p91
      %p94 = scmp.ne.s32.totalorder %s77, %s93
      %p95 = scmp.eq.s32.totalorder %s29, 0
      %p96 = por %p94, %p95
      %s97 = ssub.s32 %s31, %s38
      %p98 = scmp.eq.s32.totalorder %s97, 0
      %s100 = sadd.s32 %s99, 1
      %s101 = scalar_select %p98, %s99, %s100
      %p104 = pneg %p98
      %p105 = scmp.eq.s32.totalorder %s23, 1
      %p106 = por %p104, %p105
      %p107 = scmp.ne.s32.totalorder %s99, %s102
      %p108 = scmp.eq.s32.totalorder %s23, 0
      %p109 = por %p107, %p108
      %p110 = scmp.ne.s32.totalorder %s99, %s102
      %p111 = scmp.eq.s32.totalorder %s28, 1
      %p112 = por %p110, %p111
      %p113 = scmp.ne.s32.totalorder %s102, %s103
      %p114 = scmp.eq.s32.totalorder %s28, 0
      %p115 = por %p113, %p114
      %p116 = scmp.ne.s32.totalorder %s102, %s103
      %p117 = scmp.eq.s32.totalorder %s29, 1
      %p118 = por %p116, %p117
      %p120 = scmp.ne.s32.totalorder %s103, %s119
      %p121 = scmp.eq.s32.totalorder %s29, 0
      %p122 = por %p120, %p121
      %s124 = sadd.s32 %s123, 1
      %p127 = scmp.eq.s32.totalorder %s23, 1
      %p128 = scmp.ne.s32.totalorder %s123, %s125
      %p129 = scmp.eq.s32.totalorder %s23, 0
      %p130 = por %p128, %p129
      %p131 = scmp.ne.s32.totalorder %s123, %s125
      %p132 = scmp.eq.s32.totalorder %s28, 1
      %p133 = por %p131, %p132
      %p134 = scmp.ne.s32.totalorder %s125, %s126
      %p135 = scmp.eq.s32.totalorder %s28, 0
      %p136 = por %p134, %p135
      %p137 = scmp.ne.s32.totalorder %s125, %s126
      %p138 = scmp.eq.s32.totalorder %s29, 1
      %p139 = por %p137, %p138
      %p141 = scmp.ne.s32.totalorder %s126, %s140
      %p142 = scmp.eq.s32.totalorder %s29, 0
      %p143 = por %p141, %p142
      %s145 = sadd.s32 %s144, 1
      %p148 = scmp.eq.s32.totalorder %s23, 1
      %p149 = scmp.ne.s32.totalorder %s144, %s146
      %p150 = scmp.eq.s32.totalorder %s23, 0
      %p151 = por %p149, %p150
      %p152 = scmp.ne.s32.totalorder %s144, %s146
      %p153 = scmp.eq.s32.totalorder %s28, 1
      %p154 = por %p152, %p153
      %p155 = scmp.ne.s32.totalorder %s146, %s147
      %p156 = scmp.eq.s32.totalorder %s28, 0
      %p157 = por %p155, %p156
      %p158 = scmp.ne.s32.totalorder %s146, %s147
      %p159 = scmp.eq.s32.totalorder %s29, 1
      %p160 = por %p158, %p159
      %p162 = scmp.ne.s32.totalorder %s147, %s161
      %p163 = scmp.eq.s32.totalorder %s29, 0
      %p164 = por %p162, %p163
      %s166 = sadd.s32 %s165, 1
      %p169 = scmp.eq.s32.totalorder %s23, 1
      %p170 = scmp.ne.s32.totalorder %s165, %s167
      %p171 = scmp.eq.s32.totalorder %s23, 0
      %p172 = por %p170, %p171
      %p173 = scmp.ne.s32.totalorder %s165, %s167
      %p174 = scmp.eq.s32.totalorder %s28, 1
      %p175 = por %p173, %p174
      %p176 = scmp.ne.s32.totalorder %s167, %s168
      %p177 = scmp.eq.s32.totalorder %s28, 0
      %p178 = por %p176, %p177
      %p179 = scmp.ne.s32.totalorder %s167, %s168
      %p180 = scmp.eq.s32.totalorder %s29, 1
      %p181 = por %p179, %p180
      %p183 = scmp.ne.s32.totalorder %s168, %s182
      %p184 = scmp.eq.s32.totalorder %s29, 0
      %p185 = por %p183, %p184
      %s187 = sadd.s32 %s186, 1
      %p190 = scmp.eq.s32.totalorder %s23, 1
      %p191 = scmp.ne.s32.totalorder %s186, %s188
      %p192 = scmp.eq.s32.totalorder %s23, 0
      %p193 = por %p191, %p192
      %p194 = scmp.ne.s32.totalorder %s186, %s188
      %p195 = scmp.eq.s32.totalorder %s28, 1
      %p196 = por %p194, %p195
      %p197 = scmp.ne.s32.totalorder %s188, %s189
      %p198 = scmp.eq.s32.totalorder %s28, 0
      %p199 = por %p197, %p198
      %p200 = scmp.ne.s32.totalorder %s188, %s189
      %p201 = scmp.eq.s32.totalorder %s29, 1
      %p202 = por %p200, %p201
      %p204 = scmp.ne.s32.totalorder %s189, %s203
      %p205 = scmp.eq.s32.totalorder %s29, 0
      %p206 = por %p204, %p205
      %s207 = ssub.s32 %s30, %s42
      %p208 = scmp.eq.s32.totalorder %s207, 0
      %s210 = sadd.s32 %s209, 1
      %s211 = scalar_select %p208, %s209, %s210
      %p214 = pneg %p208
      %p215 = scmp.eq.s32.totalorder %s23, 1
      %p216 = por %p214, %p215
      %p217 = scmp.ne.s32.totalorder %s209, %s212
      %p218 = scmp.eq.s32.totalorder %s23, 0
      %p219 = por %p217, %p218
      %p220 = scmp.ne.s32.totalorder %s209, %s212
      %p221 = scmp.eq.s32.totalorder %s28, 1
      %p222 = por %p220, %p221
      %p223 = scmp.ne.s32.totalorder %s212, %s213
      %p224 = scmp.eq.s32.totalorder %s28, 0
      %p225 = por %p223, %p224
      %p226 = scmp.ne.s32.totalorder %s212, %s213
      %p227 = scmp.eq.s32.totalorder %s29, 1
      %p228 = por %p226, %p227
      %p230 = scmp.ne.s32.totalorder %s213, %s229
      %p231 = scmp.eq.s32.totalorder %s29, 0
      %p232 = por %p230, %p231
      %p233 = scmp.le.s32.totalorder 1, %s23
      %p234 = scmp.lt.s32.totalorder %s23, 3
      %p235 = pnand %p233, %p234
      %p236 = pneg %p235
      // Predicated region
      $region9: #{tpu_custom_call.1} parent=5 // pred_check
        _
      $region10: #{tpu_custom_call.1} parent=5 // pred_check_branch
        %238 = sbr.rel (%p235) target = $region12
      $region11: #{tpu_custom_call.1} parent=5 // pred_region
        %s239 = ssub.s32 %s23, 1
        // Predicated region
        $region13: #{tpu_custom_call.1} parent=11 // pred_check
          %p240 = pneg %p115
        $region14: #{tpu_custom_call.1} parent=11 // pred_check_branch
          %242 = sbr.rel (%p240) target = $region16
        $region15: #{tpu_custom_call.1} parent=11 // pred_region
          %s243 = smul.u32 16, %s33
          %245 = vsyncadd [#allocation7], 0
          %s246 = smul.addr %s243, 4
          %s247 = scalar_lea.hbm %s2, %s246
          %s248 = sshll.u32 %s247, 4
          %s249 = int_to_ptr.hbm [resolvable:$true] %s248
          %s250 = sshll.u32 [#allocation8], 4
          %s251 = int_to_ptr.vmem [resolvable:$true] %s250
          %256 = dma.hbm_to_vmem [thread:$0]  %s249, 1024, %s251, [#allocation7], 64, 64, 4
        $region16: #{tpu_custom_call.1} parent=11 // pred_fallthru
          _
        // Predicated region
        $region17: #{tpu_custom_call.1} parent=11 // pred_check
          %p257 = pneg %p136
        $region18: #{tpu_custom_call.1} parent=11 // pred_check_branch
          %259 = sbr.rel (%p257) target = $region20
        $region19: #{tpu_custom_call.1} parent=11 // pred_region
          %261 = vsyncadd [#allocation10], 0
          %s262 = sshll.u32 %s3, 4
          %s263 = int_to_ptr.hbm [resolvable:$true] %s262
          %s264 = sshll.u32 [#allocation9], 4
          %s265 = int_to_ptr.vmem [resolvable:$true] %s264
          %270 = dma.hbm_to_vmem [thread:$0]  %s263, 1024, %s265, [#allocation10], 64, 64, 4
        $region20: #{tpu_custom_call.1} parent=11 // pred_fallthru
          _
        // Predicated region
        $region21: #{tpu_custom_call.1} parent=11 // pred_check
          %p271 = pneg %p157
        $region22: #{tpu_custom_call.1} parent=11 // pred_check_branch
          %273 = sbr.rel (%p271) target = $region24
        $region23: #{tpu_custom_call.1} parent=11 // pred_region
          _
        $region24: #{tpu_custom_call.1} parent=11 // pred_fallthru
          _
        // Predicated region
        $region25: #{tpu_custom_call.1} parent=11 // pred_check
          %p274 = pneg %p178
        $region26: #{tpu_custom_call.1} parent=11 // pred_check_branch
          %276 = sbr.rel (%p274) target = $region28
        $region27: #{tpu_custom_call.1} parent=11 // pred_region
          %278 = vsyncadd [#allocation10], 0
          %s279 = sshll.u32 %s5, 4
          %s280 = int_to_ptr.hbm [resolvable:$true] %s279
          %s281 = sshll.u32 [#allocation11], 4
          %s282 = int_to_ptr.vmem [resolvable:$true] %s281
          %287 = dma.hbm_to_vmem [thread:$0]  %s280, 1024, %s282, [#allocation10], 64, 64, 4
        $region28: #{tpu_custom_call.1} parent=11 // pred_fallthru
          _
        // Predicated region
        $region29: #{tpu_custom_call.1} parent=11 // pred_check
          %p288 = pneg %p199
        $region30: #{tpu_custom_call.1} parent=11 // pred_check_branch
          %290 = sbr.rel (%p288) target = $region32
        $region31: #{tpu_custom_call.1} parent=11 // pred_region
          _
        $region32: #{tpu_custom_call.1} parent=11 // pred_fallthru
          _
      $region12: #{tpu_custom_call.1} parent=5 // pred_fallthru
        _
      %p291 = scmp.lt.s32.totalorder %s23, 2
      // Predicated region
      $region33: #{tpu_custom_call.1} parent=5 // pred_check
        %p292 = pneg %p291
      $region34: #{tpu_custom_call.1} parent=5 // pred_check_branch
        %294 = sbr.rel (%p292) target = $region36
      $region35: #{tpu_custom_call.1} parent=5 // pred_region
        // Predicated region
        $region37: #{tpu_custom_call.1} parent=35 // pred_check
          %p295 = pneg %p57
        $region38: #{tpu_custom_call.1} parent=35 // pred_check_branch
          %297 = sbr.rel (%p295) target = $region40
        $region39: #{tpu_custom_call.1} parent=35 // pred_region
          %s298 = sand.u32 %s47, 1
          %s299 = scalar_lea.sflag [#allocation4], %s298
          %s300 = sand.u32 %s47, 1
          %s301 = smul.addr %s300, 8
          %s302 = scalar_lea.vmem [#allocation3], %s301
          %s303 = smul.u32 2, %s30
          %305 = vsyncadd %s299, 0
          %s306 = sadd.s32 %s31, %s303
          %s307 = smul.addr %s306, 4
          %s308 = scalar_lea.hbm %s0, %s307
          %s309 = sshll.u32 %s308, 4
          %s310 = int_to_ptr.hbm [resolvable:$true] %s309
          %s311 = sshll.u32 %s302, 4
          %s312 = int_to_ptr.vmem [resolvable:$true] %s311
          %317 = dma.hbm_to_vmem [thread:$0]  %s310, 128, %s312, %s299, 64, 64, 4
        $region40: #{tpu_custom_call.1} parent=35 // pred_fallthru
          _
        // Predicated region
        $region41: #{tpu_custom_call.1} parent=35 // pred_check
          %p318 = pneg %p83
        $region42: #{tpu_custom_call.1} parent=35 // pred_check_branch
          %320 = sbr.rel (%p318) target = $region44
        $region43: #{tpu_custom_call.1} parent=35 // pred_region
          %s321 = sand.u32 %s23, 1
          %s322 = scalar_lea.sflag [#allocation7], %s321
          %s323 = sand.u32 %s73, 1
          %s324 = smul.addr %s323, 8
          %s325 = scalar_lea.vmem [#allocation6], %s324
          %s326 = smul.u32 2, %s30
          %328 = vsyncadd %s322, 0
          %s329 = smul.addr %s326, 4
          %s330 = scalar_lea.hbm %s1, %s329
          %s331 = sshll.u32 %s330, 4
          %s332 = int_to_ptr.hbm [resolvable:$true] %s331
          %s333 = sshll.u32 %s325, 4
          %s334 = int_to_ptr.vmem [resolvable:$true] %s333
          %339 = dma.hbm_to_vmem [thread:$0]  %s332, 128, %s334, %s322, 64, 64, 4
        $region44: #{tpu_custom_call.1} parent=35 // pred_fallthru
          _
      $region36: #{tpu_custom_call.1} parent=5 // pred_fallthru
        _
      %p340 = scmp.le.s32.totalorder 1, %s23
      %p341 = scmp.lt.s32.totalorder %s23, 3
      %p342 = pnand %p340, %p341
      %p343 = pneg %p342
      // Predicated region
      $region45: #{tpu_custom_call.1} parent=5 // pred_check
        _
      $region46: #{tpu_custom_call.1} parent=5 // pred_check_branch
        %345 = sbr.rel (%p342) target = $region48
      $region47: #{tpu_custom_call.1} parent=5 // pred_region
        %s346 = ssub.s32 %s23, 1
        %s347 = sand.u32 %s50, 1
        %s348 = scalar_lea.sflag [#allocation4], %s347
        %s349 = sand.u32 %s50, 1
        %s350 = smul.addr %s349, 8
        %s351 = scalar_lea.vmem [#allocation3], %s350
        // Predicated region
        $region49: #{tpu_custom_call.1} parent=47 // pred_check
          %p352 = pneg %p63
        $region50: #{tpu_custom_call.1} parent=47 // pred_check_branch
          %354 = sbr.rel (%p352) target = $region52
        $region51: #{tpu_custom_call.1} parent=47 // pred_region
          %356 = dma.done %s348, 128
        $region52: #{tpu_custom_call.1} parent=47 // pred_fallthru
          _
        %s357 = sand.u32 %s28, 1
        %s358 = scalar_lea.sflag [#allocation7], %s357
        %s359 = sand.u32 %s76, 1
        %s360 = smul.addr %s359, 8
        %s361 = scalar_lea.vmem [#allocation6], %s360
        // Predicated region
        $region53: #{tpu_custom_call.1} parent=47 // pred_check
          %p362 = pneg %p89
        $region54: #{tpu_custom_call.1} parent=47 // pred_check_branch
          %364 = sbr.rel (%p362) target = $region56
        $region55: #{tpu_custom_call.1} parent=47 // pred_region
          %366 = dma.done %s358, 128
        $region56: #{tpu_custom_call.1} parent=47 // pred_fallthru
          _
        // Predicated region
        $region57: #{tpu_custom_call.1} parent=47 // pred_check
          %p367 = pneg %p115
        $region58: #{tpu_custom_call.1} parent=47 // pred_check_branch
          %369 = sbr.rel (%p367) target = $region60
        $region59: #{tpu_custom_call.1} parent=47 // pred_region
          %371 = dma.done [#allocation7], 1024
        $region60: #{tpu_custom_call.1} parent=47 // pred_fallthru
          _
        // Predicated region
        $region61: #{tpu_custom_call.1} parent=47 // pred_check
          %p372 = pneg %p136
        $region62: #{tpu_custom_call.1} parent=47 // pred_check_branch
          %374 = sbr.rel (%p372) target = $region64
        $region63: #{tpu_custom_call.1} parent=47 // pred_region
          %376 = dma.done [#allocation10], 1024
        $region64: #{tpu_custom_call.1} parent=47 // pred_fallthru
          _
        // Predicated region
        $region65: #{tpu_custom_call.1} parent=47 // pred_check
          %p377 = pneg %p178
        $region66: #{tpu_custom_call.1} parent=47 // pred_check_branch
          %379 = sbr.rel (%p377) target = $region68
        $region67: #{tpu_custom_call.1} parent=47 // pred_region
          %381 = dma.done [#allocation10], 1024
        $region68: #{tpu_custom_call.1} parent=47 // pred_fallthru
          _
        %s382 = sand.u32 %s50, 1
        %s383 = scalar_lea.sflag [#allocation4], %s382
        %s384 = sand.u32 %s50, 1
        %s385 = smul.addr %s384, 8
        %s386 = scalar_lea.vmem [#allocation3], %s385
        %p387 = pneg %p63
        %p388 = pneg %p60
        %s389 = sand.u32 %s28, 1
        %s390 = scalar_lea.sflag [#allocation7], %s389
        %s391 = sand.u32 %s76, 1
        %s392 = smul.addr %s391, 8
        %s393 = scalar_lea.vmem [#allocation6], %s392
        %p394 = pneg %p89
        %p395 = pneg %p86
        %p396 = pneg %p115
        %p397 = pneg %p112
        %p398 = pneg %p136
        %p399 = pneg %p133
        %p400 = pneg %p157
        %p401 = pneg %p154
        %p402 = pneg %p178
        %p403 = pneg %p175
        %p404 = pneg %p199
        %p405 = pneg %p196
        %p406 = pneg %p225
        %p407 = pneg %p222
        %s408 = sand.u32 %s212, 1
        %s409 = scalar_lea.sflag [#allocation5], %s408
        %s410 = sand.u32 %s212, 1
        %s411 = smul.addr %s410, 16
        %s412 = scalar_lea.vmem [#allocation12], %s411
        %s413 = smul.u32 2, %s32
        %s414 = smul.u32 2, %s32
        %s415 = smul.u32 16, %s33
        %s416 = smul.u32 2, %s32
        %v417 = vld [vmem:[%s351] sm:$0xf]
        %v418 = vld [vmem:[%s351 + $0x4] sm:$0xf]
        %p419 = scmp.eq.s32.totalorder %s33, 0
        // Predicated region
        $region69: #{tpu_custom_call.1} parent=47 // pred_check
          %p420 = pneg %p419
        $region70: #{tpu_custom_call.1} parent=47 // pred_check_branch
          %422 = sbr.rel (%p420) target = $region72
        $region71: #{tpu_custom_call.1} parent=47 // pred_region
          %v423 = vld [vmem:[%s361] sm:$0xf]
          %v424 = vld [vmem:[%s361 + $0x4] sm:$0xf]
          %v425 = vld [vmem:[#allocation9] sm:$0xf]
          %v426 = vld [vmem:[#allocation9 + $0x4] sm:$0xf]
          %v427 = vld [vmem:[#allocation9 + $0x8] sm:$0xf]
          %v428 = vld [vmem:[#allocation9 + $0xc] sm:$0xf]
          %v429 = vld [vmem:[#allocation9 + $0x10] sm:$0xf]
          %v430 = vld [vmem:[#allocation9 + $0x14] sm:$0xf]
          %v431 = vld [vmem:[#allocation9 + $0x18] sm:$0xf]
          %v432 = vld [vmem:[#allocation9 + $0x1c] sm:$0xf]
          %v433 = vld [vmem:[#allocation9 + $0x20] sm:$0xf]
          %v434 = vld [vmem:[#allocation9 + $0x24] sm:$0xf]
          %v435 = vld [vmem:[#allocation9 + $0x28] sm:$0xf]
          %v436 = vld [vmem:[#allocation9 + $0x2c] sm:$0xf]
          %v437 = vld [vmem:[#allocation9 + $0x30] sm:$0xf]
          %v438 = vld [vmem:[#allocation9 + $0x34] sm:$0xf]
          %v439 = vld [vmem:[#allocation9 + $0x38] sm:$0xf]
          %v440 = vld [vmem:[#allocation9 + $0x3c] sm:$0xf]
          %v441 = vld [vmem:[%s4] sm:$0x1]
          %v443 = vperm.slane %v441, 0
          %v447 = vunpack.c.l.b16 %v423
          %v448 = vunpack.c.l.b16 %v424
          %v449 = vpack.c.b16 %v448, %v447
          %v467 = vunpack.c.l.b16 %v425
          %v468 = vunpack.c.l.b16 %v426
          %v469 = vunpack.c.l.b16 %v427
          %v470 = vunpack.c.l.b16 %v428
          %v471 = vunpack.c.l.b16 %v429
          %v472 = vunpack.c.l.b16 %v430
          %v473 = vunpack.c.l.b16 %v431
          %v474 = vunpack.c.l.b16 %v432
          %v475 = vunpack.c.l.b16 %v433
          %v476 = vunpack.c.l.b16 %v434
          %v477 = vunpack.c.l.b16 %v435
          %v478 = vunpack.c.l.b16 %v436
          %v479 = vunpack.c.l.b16 %v437
          %v480 = vunpack.c.l.b16 %v438
          %v481 = vunpack.c.l.b16 %v439
          %v482 = vunpack.c.l.b16 %v440
          %v483 = vpack.c.b16 %v468, %v467
          %v484 = vpack.c.b16 %v470, %v469
          %v485 = vpack.c.b16 %v472, %v471
          %v486 = vpack.c.b16 %v474, %v473
          %v487 = vpack.c.b16 %v476, %v475
          %v488 = vpack.c.b16 %v478, %v477
          %v489 = vpack.c.b16 %v480, %v479
          %v490 = vpack.c.b16 %v482, %v481
          %499 = vmatpush.bf16.msra.mxu0 %v490
          %500 = vmatpush.bf16.msra.mxu0 %v489
          %501 = vmatpush.bf16.msra.mxu0 %v488
          %502 = vmatpush.bf16.msra.mxu0 %v487
          %503 = vmatpush.bf16.msra.mxu0 %v486
          %504 = vmatpush.bf16.msra.mxu0 %v485
          %505 = vmatpush.bf16.msra.mxu0 %v484
          %506 = vmatpush.bf16.msra.mxu0 %v483
          %507 = vmatmul.bf16.gmra.mxu0 %v449
          %v508 = vpop.f32.mrf.mxu0
          %v509 = vadd.f32 %v443, %v508
          %v510 = vpop.f32.mrf.mxu0
          %v511 = vadd.f32 %v443, %v510
          %512 = vdwg.mxu0
          %513 = vst [vmem:[#allocation2] sm:$0xff] %v509
          %514 = vst [vmem:[#allocation2 + $0x8] sm:$0xff] %v511
        $region72: #{tpu_custom_call.1} parent=47 // pred_fallthru
          _
        %v515 = vld [vmem:[#allocation2] sm:$0xff]
        %v516 = vld [vmem:[#allocation2 + $0x8] sm:$0xff]
        %v517 = vld [vmem:[#allocation8] sm:$0xf]
        %v518 = vld [vmem:[#allocation8 + $0x4] sm:$0xf]
        %v519 = vld [vmem:[#allocation8 + $0x8] sm:$0xf]
        %v520 = vld [vmem:[#allocation8 + $0xc] sm:$0xf]
        %v521 = vld [vmem:[#allocation8 + $0x10] sm:$0xf]
        %v522 = vld [vmem:[#allocation8 + $0x14] sm:$0xf]
        %v523 = vld [vmem:[#allocation8 + $0x18] sm:$0xf]
        %v524 = vld [vmem:[#allocation8 + $0x1c] sm:$0xf]
        %v525 = vld [vmem:[#allocation8 + $0x20] sm:$0xf]
        %v526 = vld [vmem:[#allocation8 + $0x24] sm:$0xf]
        %v527 = vld [vmem:[#allocation8 + $0x28] sm:$0xf]
        %v528 = vld [vmem:[#allocation8 + $0x2c] sm:$0xf]
        %v529 = vld [vmem:[#allocation8 + $0x30] sm:$0xf]
        %v530 = vld [vmem:[#allocation8 + $0x34] sm:$0xf]
        %v531 = vld [vmem:[#allocation8 + $0x38] sm:$0xf]
        %v532 = vld [vmem:[#allocation8 + $0x3c] sm:$0xf]
        %v535 = vunpack.c.l.b16 %v417
        %v536 = vunpack.c.l.b16 %v418
        %v537 = vpack.c.b16 %v536, %v535
        %v555 = vunpack.c.l.b16 %v517
        %v556 = vunpack.c.l.b16 %v518
        %v557 = vunpack.c.l.b16 %v519
        %v558 = vunpack.c.l.b16 %v520
        %v559 = vunpack.c.l.b16 %v521
        %v560 = vunpack.c.l.b16 %v522
        %v561 = vunpack.c.l.b16 %v523
        %v562 = vunpack.c.l.b16 %v524
        %v563 = vunpack.c.l.b16 %v525
        %v564 = vunpack.c.l.b16 %v526
        %v565 = vunpack.c.l.b16 %v527
        %v566 = vunpack.c.l.b16 %v528
        %v567 = vunpack.c.l.b16 %v529
        %v568 = vunpack.c.l.b16 %v530
        %v569 = vunpack.c.l.b16 %v531
        %v570 = vunpack.c.l.b16 %v532
        %v571 = vpack.c.b16 %v556, %v555
        %v572 = vpack.c.b16 %v558, %v557
        %v573 = vpack.c.b16 %v560, %v559
        %v574 = vpack.c.b16 %v562, %v561
        %v575 = vpack.c.b16 %v564, %v563
        %v576 = vpack.c.b16 %v566, %v565
        %v577 = vpack.c.b16 %v568, %v567
        %v578 = vpack.c.b16 %v570, %v569
        %587 = vmatpush.bf16.msra.mxu0 %v578
        %588 = vmatpush.bf16.msra.mxu0 %v577
        %589 = vmatpush.bf16.msra.mxu0 %v576
        %590 = vmatpush.bf16.msra.mxu0 %v575
        %591 = vmatpush.bf16.msra.mxu0 %v574
        %592 = vmatpush.bf16.msra.mxu0 %v573
        %593 = vmatpush.bf16.msra.mxu0 %v572
        %594 = vmatpush.bf16.msra.mxu0 %v571
        %595 = vmatmul.bf16.gmra.mxu0 %v537
        %v596 = vpop.f32.mrf.mxu0
        %v597 = vadd.f32 0.0, %v596
        %v598 = vpop.f32.mrf.mxu0
        %v599 = vadd.f32 0.0, %v598
        %600 = vdwg.mxu0
        %v601 = vadd.f32 %v515, %v597
        %v602 = vadd.f32 %v516, %v599
        %603 = vst [vmem:[#allocation2] sm:$0xff] %v601
        %604 = vst [vmem:[#allocation2 + $0x8] sm:$0xff] %v602
        // Predicated region
        $region73: #{tpu_custom_call.1} parent=47 // pred_check
          %p605 = pneg %p419
        $region74: #{tpu_custom_call.1} parent=47 // pred_check_branch
          %607 = sbr.rel (%p605) target = $region76
        $region75: #{tpu_custom_call.1} parent=47 // pred_region
          %v608 = vld [vmem:[#allocation2] sm:$0xff]
          %v609 = vld [vmem:[#allocation2 + $0x8] sm:$0xff]
          %v610 = vtanh.pop %v608
          %v611 = vtanh.pop %v609
          %v612 = vld [vmem:[#allocation11] sm:$0xf]
          %v613 = vld [vmem:[#allocation11 + $0x4] sm:$0xf]
          %v614 = vld [vmem:[#allocation11 + $0x8] sm:$0xf]
          %v615 = vld [vmem:[#allocation11 + $0xc] sm:$0xf]
          %v616 = vld [vmem:[#allocation11 + $0x10] sm:$0xf]
          %v617 = vld [vmem:[#allocation11 + $0x14] sm:$0xf]
          %v618 = vld [vmem:[#allocation11 + $0x18] sm:$0xf]
          %v619 = vld [vmem:[#allocation11 + $0x1c] sm:$0xf]
          %v620 = vld [vmem:[#allocation11 + $0x20] sm:$0xf]
          %v621 = vld [vmem:[#allocation11 + $0x24] sm:$0xf]
          %v622 = vld [vmem:[#allocation11 + $0x28] sm:$0xf]
          %v623 = vld [vmem:[#allocation11 + $0x2c] sm:$0xf]
          %v624 = vld [vmem:[#allocation11 + $0x30] sm:$0xf]
          %v625 = vld [vmem:[#allocation11 + $0x34] sm:$0xf]
          %v626 = vld [vmem:[#allocation11 + $0x38] sm:$0xf]
          %v627 = vld [vmem:[#allocation11 + $0x3c] sm:$0xf]
          %v628 = vld [vmem:[%s6] sm:$0x1]
          %v629 = vpack.c.bf16 %v611, %v610
          %v631 = vperm.slane %v628, 0
          %v649 = vunpack.c.l.b16 %v612
          %v650 = vunpack.c.l.b16 %v613
          %v651 = vunpack.c.l.b16 %v614
          %v652 = vunpack.c.l.b16 %v615
          %v653 = vunpack.c.l.b16 %v616
          %v654 = vunpack.c.l.b16 %v617
          %v655 = vunpack.c.l.b16 %v618
          %v656 = vunpack.c.l.b16 %v619
          %v657 = vunpack.c.l.b16 %v620
          %v658 = vunpack.c.l.b16 %v621
          %v659 = vunpack.c.l.b16 %v622
          %v660 = vunpack.c.l.b16 %v623
          %v661 = vunpack.c.l.b16 %v624
          %v662 = vunpack.c.l.b16 %v625
          %v663 = vunpack.c.l.b16 %v626
          %v664 = vunpack.c.l.b16 %v627
          %v665 = vpack.c.b16 %v650, %v649
          %v666 = vpack.c.b16 %v652, %v651
          %v667 = vpack.c.b16 %v654, %v653
          %v668 = vpack.c.b16 %v656, %v655
          %v669 = vpack.c.b16 %v658, %v657
          %v670 = vpack.c.b16 %v660, %v659
          %v671 = vpack.c.b16 %v662, %v661
          %v672 = vpack.c.b16 %v664, %v663
          %681 = vmatpush.bf16.msra.mxu0 %v672
          %682 = vmatpush.bf16.msra.mxu0 %v671
          %683 = vmatpush.bf16.msra.mxu0 %v670
          %684 = vmatpush.bf16.msra.mxu0 %v669
          %685 = vmatpush.bf16.msra.mxu0 %v668
          %686 = vmatpush.bf16.msra.mxu0 %v667
          %687 = vmatpush.bf16.msra.mxu0 %v666
          %688 = vmatpush.bf16.msra.mxu0 %v665
          %689 = vmatmul.bf16.gmra.mxu0 %v629
          %v690 = vpop.f32.mrf.mxu0
          %v691 = vadd.f32 %v631, %v690
          %v692 = vpop.f32.mrf.mxu0
          %v693 = vadd.f32 %v631, %v692
          %694 = vdwg.mxu0
          %695 = vst [vmem:[%s412] sm:$0xff] %v691
          %696 = vst [vmem:[%s412 + $0x8] sm:$0xff] %v693
        $region76: #{tpu_custom_call.1} parent=47 // pred_fallthru
          _
        %s697 = sand.u32 %s212, 1
        %s698 = scalar_lea.sflag [#allocation5], %s697
        %s699 = sand.u32 %s212, 1
        %s700 = smul.addr %s699, 16
        %s701 = scalar_lea.vmem [#allocation12], %s700
        // Predicated region
        $region77: #{tpu_custom_call.1} parent=47 // pred_check
          %p702 = pneg %p222
        $region78: #{tpu_custom_call.1} parent=47 // pred_check_branch
          %704 = sbr.rel (%p702) target = $region80
        $region79: #{tpu_custom_call.1} parent=47 // pred_region
          %s705 = smul.u32 2, %s32
          %707 = vsyncadd %s698, 0
          %s708 = smul.addr %s705, 8
          %s709 = scalar_lea.hbm %s7, %s708
          %s710 = sshll.u32 %s701, 4
          %s711 = int_to_ptr.vmem [resolvable:$true] %s710
          %s712 = sshll.u32 %s709, 4
          %s713 = int_to_ptr.hbm [resolvable:$true] %s712
          %718 = dma.vmem_to_hbm [thread:$0]  %s711, 256, %s713, %s698, 128, 128, 8
        $region80: #{tpu_custom_call.1} parent=47 // pred_fallthru
          _
      $region48: #{tpu_custom_call.1} parent=5 // pred_fallthru
        _
      %p719 = scmp.le.s32.totalorder 2, %s23
      // Predicated region
      $region81: #{tpu_custom_call.1} parent=5 // pred_check
        %p720 = pneg %p719
      $region82: #{tpu_custom_call.1} parent=5 // pred_check_branch
        %722 = sbr.rel (%p720) target = $region84
      $region83: #{tpu_custom_call.1} parent=5 // pred_region
        %s723 = ssub.s32 %s23, 2
        // Predicated region
        $region85: #{tpu_custom_call.1} parent=83 // pred_check
          %p724 = pneg %p228
        $region86: #{tpu_custom_call.1} parent=83 // pred_check_branch
          %726 = sbr.rel (%p724) target = $region88
        $region87: #{tpu_custom_call.1} parent=83 // pred_region
          %s727 = sand.u32 %s213, 1
          %s728 = scalar_lea.sflag [#allocation5], %s727
          %s729 = sand.u32 %s213, 1
          %s730 = smul.addr %s729, 16
          %s731 = scalar_lea.vmem [#allocation12], %s730
          %733 = dma.done %s728, 256
        $region88: #{tpu_custom_call.1} parent=83 // pred_fallthru
          _
      $region84: #{tpu_custom_call.1} parent=5 // pred_fallthru
        _
    $region6: #{tpu_custom_call.1} parent=1 // loop_footer
      %s27 = sadd.s32 1, %s23
    $region7: #{tpu_custom_call.1} parent=1 // loop_footer_branch
      %22 = sbr.rel target = $region3
    $region8: #{tpu_custom_call.1} parent=1 // loop_exit
      _
    %734 = vsyncpa [#allocation4], 1
    %s735 = scalar_lea.sflag [#allocation4], 1
    %736 = vsyncpa %s735, 1
    %737 = vsyncpa [#allocation7], 1
    %s738 = scalar_lea.sflag [#allocation7], 1
    %739 = vsyncpa %s738, 1
    %740 = vsyncpa [#allocation10], 1
    %741 = vsyncpa [#allocation5], 1
    %s742 = scalar_lea.sflag [#allocation5], 1
    %743 = vsyncpa %s742, 1

</llo_original>
